<compile_context>
chip_gen: v6e
topology: v6e:2x2x1
jax: 0.10.0
libtpu: 0.0.40
codegen_flags: <defaults>
</compile_context>

<pallas_src>
import jax
import jax.numpy as jnp
import numpy as np
from jax.experimental import pallas as pl
from jax.experimental.pallas import tpu as pltpu

BN_EPS = 1e-5


def _gin_forward_kernel(x_ref, adj_ref, w1a_ref, convw_ref, bnb_ref,
                        l1w_ref, l1b_ref, l2w_ref, l2b_ref, out_ref):
    """One graph per grid step. All matmuls accumulate in f32 on the MXU."""
    x = x_ref[0]        # [N, F]
    adj = adj_ref[0]    # [N, N]
    n = adj.shape[0]

    def graph_conv(h, wa, bias, wb):
        # GraphConv(mlp): mlp(adj @ h); BatchNorm is pre-folded into wa / bias.
        agg = jnp.dot(adj, h, preferred_element_type=jnp.float32)
        z = jnp.dot(agg, wa, preferred_element_type=jnp.float32) + bias
        z = jnp.maximum(z, 0.0)                       # ReLU
        z = jnp.dot(z, wb, preferred_element_type=jnp.float32)
        return jnp.maximum(z, 0.0)                    # ReLU

    h1 = graph_conv(x,  w1a_ref[...], bnb_ref[0:1, :], convw_ref[0])
    h2 = graph_conv(h1, convw_ref[1], bnb_ref[1:2, :], convw_ref[2])
    h3 = graph_conv(h2, convw_ref[3], bnb_ref[2:3, :], convw_ref[4])

    # Sum pooling over nodes as a ones-row MXU matmul (keeps it off the XLU).
    ones_row = jnp.ones((1, n), jnp.float32)
    p1 = jnp.dot(ones_row, h1, preferred_element_type=jnp.float32)   # [1, H]
    p2 = jnp.dot(ones_row, h2, preferred_element_type=jnp.float32)
    p3 = jnp.dot(ones_row, h3, preferred_element_type=jnp.float32)

    # concat([p1,p2,p3], axis=1) @ lin1.W == p1@W[0:H] + p2@W[H:2H] + p3@W[2H:3H]
    h = (jnp.dot(p1, l1w_ref[0], preferred_element_type=jnp.float32)
         + jnp.dot(p2, l1w_ref[1], preferred_element_type=jnp.float32)
         + jnp.dot(p3, l1w_ref[2], preferred_element_type=jnp.float32)
         + l1b_ref[...])
    h = jnp.maximum(h, 0.0)
    # TODO(synk): dropout(p=0.5) is identity in eval mode; training-mode
    # dropout and BatchNorm running-stat updates are not implemented.
    logits = jnp.dot(h, l2w_ref[...], preferred_element_type=jnp.float32) + l2b_ref[...]
    out_ref[0] = logits            # lane-dense (1, Cp) store


def _fold_bn(w, gamma, beta, mean, var):
    """Fold eval-mode BatchNorm1d into the preceding (bias-free) Linear."""
    scale = gamma / jnp.sqrt(var + BN_EPS)            # [H]
    return w * scale[None, :], (beta - mean * scale)[None, :]


def gin_forward(x, adj, params, num_classes):
    """x: [B, N, F], adj: [B, N, N]  ->  logits [B, num_classes]."""
    B, N, F = x.shape
    H = params["conv1"]["w_out"].shape[0]
    C = num_classes
    Cp = ((max(C, 1) + 127) // 128) * 128             # lane-dense padded width

    w1a, b1 = _fold_bn(params["conv1"]["w_in"], params["conv1"]["bn_gamma"],
                       params["conv1"]["bn_beta"], params["conv1"]["bn_mean"],
                       params["conv1"]["bn_var"])
    w2a, b2 = _fold_bn(params["conv2"]["w_in"], params["conv2"]["bn_gamma"],
                       params["conv2"]["bn_beta"], params["conv2"]["bn_mean"],
                       params["conv2"]["bn_var"])
    w3a, b3 = _fold_bn(params["conv3"]["w_in"], params["conv3"]["bn_gamma"],
                       params["conv3"]["bn_beta"], params["conv3"]["bn_mean"],
                       params["conv3"]["bn_var"])

    # Pack parameters into a handful of slabs (fewer DMAs, no tiny (1,H) tiles).
    convw = jnp.stack([params["conv1"]["w_out"], w2a, params["conv2"]["w_out"],
                       w3a, params["conv3"]["w_out"]], axis=0)        # [5, H, H]
    bnb = jnp.concatenate([b1, b2, b3], axis=0)                       # [3, H]
    l1w3 = params["lin1"]["w"].reshape(3, H, 3 * H)                   # split lin1
    l1b = params["lin1"]["b"].reshape(1, 3 * H)
    l2w = jnp.zeros((3 * H, Cp), jnp.float32).at[:, :C].set(params["lin2"]["w"])
    l2b = jnp.zeros((1, Cp), jnp.float32).at[:, :C].set(
        params["lin2"]["b"].reshape(1, C))

    out = pl.pallas_call(
        _gin_forward_kernel,
        out_shape=jax.ShapeDtypeStruct((B, 1, Cp), jnp.float32),
        grid=(B,),
        in_specs=[
            pl.BlockSpec((1, N, F), lambda b: (b, 0, 0)),            # x
            pl.BlockSpec((1, N, N), lambda b: (b, 0, 0)),            # adj
            pl.BlockSpec((F, H), lambda b: (0, 0)),                  # conv1.w_in (folded)
            pl.BlockSpec((5, H, H), lambda b: (0, 0, 0)),            # conv weight slab
            pl.BlockSpec((3, H), lambda b: (0, 0)),                  # folded BN biases
            pl.BlockSpec((3, H, 3 * H), lambda b: (0, 0, 0)),        # lin1 weight (split)
            pl.BlockSpec((1, 3 * H), lambda b: (0, 0)),              # lin1 bias
            pl.BlockSpec((3 * H, Cp), lambda b: (0, 0)),             # lin2 weight (padded)
            pl.BlockSpec((1, Cp), lambda b: (0, 0)),                 # lin2 bias (padded)
        ],
        out_specs=pl.BlockSpec((1, 1, Cp), lambda b: (b, 0, 0)),
        compiler_params=pltpu.CompilerParams(
            dimension_semantics=("parallel",)),
    )(x, adj, w1a, convw, bnb, l1w3, l1b, l2w, l2b)
    return out[:, 0, :C]


def gin_forward_reference(x, adj, params):
    """Pure-JAX reference mirroring the PyTorch module (eval mode)."""
    def bn(z, p):
        inv = 1.0 / jnp.sqrt(p["bn_var"] + BN_EPS)
        return (z - p["bn_mean"]) * inv * p["bn_gamma"] + p["bn_beta"]

    def conv(h, a, p):
        z = (a @ h) @ p["w_in"]
        z = jax.nn.relu(bn(z, p))
        return jax.nn.relu(z @ p["w_out"])

    def single(xg, ag):
        h1 = conv(xg, ag, params["conv1"])
        h2 = conv(h1, ag, params["conv2"])
        h3 = conv(h2, ag, params["conv3"])
        p1 = jnp.sum(h1, axis=0, keepdims=True)
        p2 = jnp.sum(h2, axis=0, keepdims=True)
        p3 = jnp.sum(h3, axis=0, keepdims=True)
        h = jnp.concatenate([p1, p2, p3], axis=1)
        h = jax.nn.relu(h @ params["lin1"]["w"] + params["lin1"]["b"])
        return h @ params["lin2"]["w"] + params["lin2"]["b"]

    return jax.vmap(single)(x, adj)[:, 0, :]


def make_params(key, num_node_features, dim_h, num_classes):
    keys = jax.random.split(key, 10)

    def lin(k, fan_in, fan_out):
        return (jax.random.normal(k, (fan_in, fan_out), jnp.float32)
                / jnp.sqrt(fan_in))

    def bn_params():
        # PyTorch BatchNorm1d defaults: gamma=1, beta=0, running stats (0, 1).
        return dict(bn_gamma=jnp.ones((dim_h,), jnp.float32),
                    bn_beta=jnp.zeros((dim_h,), jnp.float32),
                    bn_mean=jnp.zeros((dim_h,), jnp.float32),
                    bn_var=jnp.ones((dim_h,), jnp.float32))

    return {
        "conv1": dict(w_in=lin(keys[0], num_node_features, dim_h),
                      w_out=lin(keys[1], dim_h, dim_h), **bn_params()),
        "conv2": dict(w_in=lin(keys[2], dim_h, dim_h),
                      w_out=lin(keys[3], dim_h, dim_h), **bn_params()),
        "conv3": dict(w_in=lin(keys[4], dim_h, dim_h),
                      w_out=lin(keys[5], dim_h, dim_h), **bn_params()),
        "lin1": dict(w=lin(keys[6], 3 * dim_h, 3 * dim_h),
                     b=jax.random.normal(keys[7], (3 * dim_h,), jnp.float32) * 0.01),
        "lin2": dict(w=lin(keys[8], 3 * dim_h, num_classes),
                     b=jax.random.normal(keys[9], (num_classes,), jnp.float32) * 0.01),
    }


if __name__ == "__main__":
    key = jax.random.PRNGKey(0)
    k_x, k_adj, k_params = jax.random.split(key, 3)

    B = 4                    # batch of graphs (one per grid step)
    N = 16                   # nodes per graph
    num_node_features = 8
    dim_h = 32
    num_classes = 4

    x = jax.random.normal(k_x, (B, N, num_node_features), jnp.float32)
    # random symmetric adjacency with self loops, per graph
    a = (jax.random.uniform(k_adj, (B, N, N)) < 0.3).astype(jnp.float32)
    adj = jnp.clip(a + jnp.swapaxes(a, 1, 2) + jnp.eye(N, dtype=jnp.float32)[None],
                   0.0, 1.0)

    params = make_params(k_params, num_node_features, dim_h, num_classes)

    out = gin_forward(x, adj, params, num_classes)
    jax.block_until_ready(out)
    assert out.shape == (B, num_classes)

    ref = gin_forward_reference(x, adj, params)
    np.testing.assert_allclose(np.asarray(out), np.asarray(ref),
                               rtol=2e-3, atol=2e-3)

    print("KERNEL_OK")
</pallas_src>

<mosaic_0001>
module attributes {stable_mosaic.version = 11 : i64} {
  func.func @_gin_forward_kernel(%arg0: i32, %arg1: memref<1x16x8xf32, #tpu.memory_space<vmem>>, %arg2: memref<1x16x16xf32, #tpu.memory_space<vmem>>, %arg3: memref<8x32xf32, #tpu.memory_space<vmem>>, %arg4: memref<5x32x32xf32, #tpu.memory_space<vmem>>, %arg5: memref<3x32xf32, #tpu.memory_space<vmem>>, %arg6: memref<3x32x96xf32, #tpu.memory_space<vmem>>, %arg7: memref<1x96xf32, #tpu.memory_space<vmem>>, %arg8: memref<96x128xf32, #tpu.memory_space<vmem>>, %arg9: memref<1x128xf32, #tpu.memory_space<vmem>>, %arg10: memref<1x1x128xf32, #tpu.memory_space<vmem>>) attributes {dimension_semantics = [#tpu.dimension_semantics<parallel>], iteration_bounds = array<i64: 4>, scalar_prefetch = 0 : i64, scratch_operands = 0 : i64, tpu.core_type = #tpu.core_type<tc>, window_params = [{transform_indices = @transform_0, window_bounds = array<i64: 1, 16, 8>}, {transform_indices = @transform_1, window_bounds = array<i64: 1, 16, 16>}, {pipeline_mode = #tpu.pipeline_mode<synchronous>, transform_indices = @transform_2, window_bounds = array<i64: 8, 32>}, {pipeline_mode = #tpu.pipeline_mode<synchronous>, transform_indices = @transform_3, window_bounds = array<i64: 5, 32, 32>}, {pipeline_mode = #tpu.pipeline_mode<synchronous>, transform_indices = @transform_4, window_bounds = array<i64: 3, 32>}, {pipeline_mode = #tpu.pipeline_mode<synchronous>, transform_indices = @transform_5, window_bounds = array<i64: 3, 32, 96>}, {pipeline_mode = #tpu.pipeline_mode<synchronous>, transform_indices = @transform_6, window_bounds = array<i64: 1, 96>}, {pipeline_mode = #tpu.pipeline_mode<synchronous>, transform_indices = @transform_7, window_bounds = array<i64: 96, 128>}, {pipeline_mode = #tpu.pipeline_mode<synchronous>, transform_indices = @transform_8, window_bounds = array<i64: 1, 128>}, {transform_indices = @transform_9, window_bounds = array<i64: 1, 1, 128>}]} {
    %c0 = arith.constant 0 : index
    %c0_0 = arith.constant 0 : index
    %c0_1 = arith.constant 0 : index
    %0 = vector.load %arg1[%c0, %c0_0, %c0_1] : memref<1x16x8xf32, #tpu.memory_space<vmem>>, vector<1x16x8xf32>
    %1 = vector.shape_cast %0 : vector<1x16x8xf32> to vector<16x8xf32>
    %c0_2 = arith.constant 0 : index
    %c0_3 = arith.constant 0 : index
    %c0_4 = arith.constant 0 : index
    %2 = vector.load %arg2[%c0_2, %c0_3, %c0_4] : memref<1x16x16xf32, #tpu.memory_space<vmem>>, vector<1x16x16xf32>
    %3 = vector.shape_cast %2 : vector<1x16x16xf32> to vector<16x16xf32>
    %c0_5 = arith.constant 0 : index
    %c0_6 = arith.constant 0 : index
    %4 = vector.load %arg3[%c0_5, %c0_6] : memref<8x32xf32, #tpu.memory_space<vmem>>, vector<8x32xf32>
    %c0_7 = arith.constant 0 : index
    %c0_8 = arith.constant 0 : index
    %5 = vector.load %arg5[%c0_7, %c0_8] : memref<3x32xf32, #tpu.memory_space<vmem>>, vector<1x32xf32>
    %c0_9 = arith.constant 0 : index
    %c0_10 = arith.constant 0 : index
    %c0_11 = arith.constant 0 : index
    %6 = vector.load %arg4[%c0_9, %c0_10, %c0_11] : memref<5x32x32xf32, #tpu.memory_space<vmem>>, vector<1x32x32xf32>
    %7 = vector.shape_cast %6 : vector<1x32x32xf32> to vector<32x32xf32>
    %cst = arith.constant dense<0.000000e+00> : vector<16x8xf32>
    %8 = tpu.matmul %3, %1, %cst {dimension_numbers = #tpu.dot_dimension_numbers<[1], [0], [0], [1], [0, 0, 1, 1], [], []>} : vector<16x16xf32>, vector<16x8xf32>, vector<16x8xf32> -> vector<16x8xf32>
    %cst_12 = arith.constant dense<0.000000e+00> : vector<16x32xf32>
    %9 = tpu.matmul %8, %4, %cst_12 {dimension_numbers = #tpu.dot_dimension_numbers<[1], [0], [0], [1], [0, 0, 1, 1], [], []>} : vector<16x8xf32>, vector<8x32xf32>, vector<16x32xf32> -> vector<16x32xf32>
    %10 = vector.broadcast %5 : vector<1x32xf32> to vector<16x32xf32>
    %11 = arith.addf %9, %10 : vector<16x32xf32>
    %cst_13 = arith.constant 0.000000e+00 : f32
    %12 = vector.broadcast %cst_13 : f32 to vector<16x32xf32>
    %13 = arith.maximumf %11, %12 : vector<16x32xf32>
    %cst_14 = arith.constant dense<0.000000e+00> : vector<16x32xf32>
    %14 = tpu.matmul %13, %7, %cst_14 {dimension_numbers = #tpu.dot_dimension_numbers<[1], [0], [0], [1], [0, 0, 1, 1], [], []>} : vector<16x32xf32>, vector<32x32xf32>, vector<16x32xf32> -> vector<16x32xf32>
    %cst_15 = arith.constant 0.000000e+00 : f32
    %15 = vector.broadcast %cst_15 : f32 to vector<16x32xf32>
    %16 = arith.maximumf %14, %15 : vector<16x32xf32>
    %c1 = arith.constant 1 : index
    %c0_16 = arith.constant 0 : index
    %c0_17 = arith.constant 0 : index
    %17 = vector.load %arg4[%c1, %c0_16, %c0_17] : memref<5x32x32xf32, #tpu.memory_space<vmem>>, vector<1x32x32xf32>
    %18 = vector.shape_cast %17 : vector<1x32x32xf32> to vector<32x32xf32>
    %c1_18 = arith.constant 1 : index
    %c0_19 = arith.constant 0 : index
    %19 = vector.load %arg5[%c1_18, %c0_19] : memref<3x32xf32, #tpu.memory_space<vmem>>, vector<1x32xf32>
    %c2 = arith.constant 2 : index
    %c0_20 = arith.constant 0 : index
    %c0_21 = arith.constant 0 : index
    %20 = vector.load %arg4[%c2, %c0_20, %c0_21] : memref<5x32x32xf32, #tpu.memory_space<vmem>>, vector<1x32x32xf32>
    %21 = vector.shape_cast %20 : vector<1x32x32xf32> to vector<32x32xf32>
    %cst_22 = arith.constant dense<0.000000e+00> : vector<16x32xf32>
    %22 = tpu.matmul %3, %16, %cst_22 {dimension_numbers = #tpu.dot_dimension_numbers<[1], [0], [0], [1], [0, 0, 1, 1], [], []>} : vector<16x16xf32>, vector<16x32xf32>, vector<16x32xf32> -> vector<16x32xf32>
    %cst_23 = arith.constant dense<0.000000e+00> : vector<16x32xf32>
    %23 = tpu.matmul %22, %18, %cst_23 {dimension_numbers = #tpu.dot_dimension_numbers<[1], [0], [0], [1], [0, 0, 1, 1], [], []>} : vector<16x32xf32>, vector<32x32xf32>, vector<16x32xf32> -> vector<16x32xf32>
    %24 = vector.broadcast %19 : vector<1x32xf32> to vector<16x32xf32>
    %25 = arith.addf %23, %24 : vector<16x32xf32>
    %cst_24 = arith.constant 0.000000e+00 : f32
    %26 = vector.broadcast %cst_24 : f32 to vector<16x32xf32>
    %27 = arith.maximumf %25, %26 : vector<16x32xf32>
    %cst_25 = arith.constant dense<0.000000e+00> : vector<16x32xf32>
    %28 = tpu.matmul %27, %21, %cst_25 {dimension_numbers = #tpu.dot_dimension_numbers<[1], [0], [0], [1], [0, 0, 1, 1], [], []>} : vector<16x32xf32>, vector<32x32xf32>, vector<16x32xf32> -> vector<16x32xf32>
    %cst_26 = arith.constant 0.000000e+00 : f32
    %29 = vector.broadcast %cst_26 : f32 to vector<16x32xf32>
    %30 = arith.maximumf %28, %29 : vector<16x32xf32>
    %c3 = arith.constant 3 : index
    %c0_27 = arith.constant 0 : index
    %c0_28 = arith.constant 0 : index
    %31 = vector.load %arg4[%c3, %c0_27, %c0_28] : memref<5x32x32xf32, #tpu.memory_space<vmem>>, vector<1x32x32xf32>
    %32 = vector.shape_cast %31 : vector<1x32x32xf32> to vector<32x32xf32>
    %c2_29 = arith.constant 2 : index
    %c0_30 = arith.constant 0 : index
    %33 = vector.load %arg5[%c2_29, %c0_30] : memref<3x32xf32, #tpu.memory_space<vmem>>, vector<1x32xf32>
    %c4 = arith.constant 4 : index
    %c0_31 = arith.constant 0 : index
    %c0_32 = arith.constant 0 : index
    %34 = vector.load %arg4[%c4, %c0_31, %c0_32] : memref<5x32x32xf32, #tpu.memory_space<vmem>>, vector<1x32x32xf32>
    %35 = vector.shape_cast %34 : vector<1x32x32xf32> to vector<32x32xf32>
    %cst_33 = arith.constant dense<0.000000e+00> : vector<16x32xf32>
    %36 = tpu.matmul %3, %30, %cst_33 {dimension_numbers = #tpu.dot_dimension_numbers<[1], [0], [0], [1], [0, 0, 1, 1], [], []>} : vector<16x16xf32>, vector<16x32xf32>, vector<16x32xf32> -> vector<16x32xf32>
    %cst_34 = arith.constant dense<0.000000e+00> : vector<16x32xf32>
    %37 = tpu.matmul %36, %32, %cst_34 {dimension_numbers = #tpu.dot_dimension_numbers<[1], [0], [0], [1], [0, 0, 1, 1], [], []>} : vector<16x32xf32>, vector<32x32xf32>, vector<16x32xf32> -> vector<16x32xf32>
    %38 = vector.broadcast %33 : vector<1x32xf32> to vector<16x32xf32>
    %39 = arith.addf %37, %38 : vector<16x32xf32>
    %cst_35 = arith.constant 0.000000e+00 : f32
    %40 = vector.broadcast %cst_35 : f32 to vector<16x32xf32>
    %41 = arith.maximumf %39, %40 : vector<16x32xf32>
    %cst_36 = arith.constant dense<0.000000e+00> : vector<16x32xf32>
    %42 = tpu.matmul %41, %35, %cst_36 {dimension_numbers = #tpu.dot_dimension_numbers<[1], [0], [0], [1], [0, 0, 1, 1], [], []>} : vector<16x32xf32>, vector<32x32xf32>, vector<16x32xf32> -> vector<16x32xf32>
    %cst_37 = arith.constant 0.000000e+00 : f32
    %43 = vector.broadcast %cst_37 : f32 to vector<16x32xf32>
    %44 = arith.maximumf %42, %43 : vector<16x32xf32>
    %cst_38 = arith.constant 1.000000e+00 : f32
    %45 = vector.broadcast %cst_38 : f32 to vector<1x16xf32>
    %cst_39 = arith.constant dense<0.000000e+00> : vector<1x32xf32>
    %46 = tpu.matmul %45, %16, %cst_39 {dimension_numbers = #tpu.dot_dimension_numbers<[1], [0], [0], [1], [0, 0, 1, 1], [], []>} : vector<1x16xf32>, vector<16x32xf32>, vector<1x32xf32> -> vector<1x32xf32>
    %cst_40 = arith.constant dense<0.000000e+00> : vector<1x32xf32>
    %47 = tpu.matmul %45, %30, %cst_40 {dimension_numbers = #tpu.dot_dimension_numbers<[1], [0], [0], [1], [0, 0, 1, 1], [], []>} : vector<1x16xf32>, vector<16x32xf32>, vector<1x32xf32> -> vector<1x32xf32>
    %cst_41 = arith.constant dense<0.000000e+00> : vector<1x32xf32>
    %48 = tpu.matmul %45, %44, %cst_41 {dimension_numbers = #tpu.dot_dimension_numbers<[1], [0], [0], [1], [0, 0, 1, 1], [], []>} : vector<1x16xf32>, vector<16x32xf32>, vector<1x32xf32> -> vector<1x32xf32>
    %c0_42 = arith.constant 0 : index
    %c0_43 = arith.constant 0 : index
    %c0_44 = arith.constant 0 : index
    %49 = vector.load %arg6[%c0_42, %c0_43, %c0_44] : memref<3x32x96xf32, #tpu.memory_space<vmem>>, vector<1x32x96xf32>
    %50 = vector.shape_cast %49 : vector<1x32x96xf32> to vector<32x96xf32>
    %cst_45 = arith.constant dense<0.000000e+00> : vector<1x96xf32>
    %51 = tpu.matmul %46, %50, %cst_45 {dimension_numbers = #tpu.dot_dimension_numbers<[1], [0], [0], [1], [0, 0, 1, 1], [], []>} : vector<1x32xf32>, vector<32x96xf32>, vector<1x96xf32> -> vector<1x96xf32>
    %c1_46 = arith.constant 1 : index
    %c0_47 = arith.constant 0 : index
    %c0_48 = arith.constant 0 : index
    %52 = vector.load %arg6[%c1_46, %c0_47, %c0_48] : memref<3x32x96xf32, #tpu.memory_space<vmem>>, vector<1x32x96xf32>
    %53 = vector.shape_cast %52 : vector<1x32x96xf32> to vector<32x96xf32>
    %cst_49 = arith.constant dense<0.000000e+00> : vector<1x96xf32>
    %54 = tpu.matmul %47, %53, %cst_49 {dimension_numbers = #tpu.dot_dimension_numbers<[1], [0], [0], [1], [0, 0, 1, 1], [], []>} : vector<1x32xf32>, vector<32x96xf32>, vector<1x96xf32> -> vector<1x96xf32>
    %55 = arith.addf %51, %54 : vector<1x96xf32>
    %c2_50 = arith.constant 2 : index
    %c0_51 = arith.constant 0 : index
    %c0_52 = arith.constant 0 : index
    %56 = vector.load %arg6[%c2_50, %c0_51, %c0_52] : memref<3x32x96xf32, #tpu.memory_space<vmem>>, vector<1x32x96xf32>
    %57 = vector.shape_cast %56 : vector<1x32x96xf32> to vector<32x96xf32>
    %cst_53 = arith.constant dense<0.000000e+00> : vector<1x96xf32>
    %58 = tpu.matmul %48, %57, %cst_53 {dimension_numbers = #tpu.dot_dimension_numbers<[1], [0], [0], [1], [0, 0, 1, 1], [], []>} : vector<1x32xf32>, vector<32x96xf32>, vector<1x96xf32> -> vector<1x96xf32>
    %59 = arith.addf %55, %58 : vector<1x96xf32>
    %c0_54 = arith.constant 0 : index
    %c0_55 = arith.constant 0 : index
    %60 = vector.load %arg7[%c0_54, %c0_55] : memref<1x96xf32, #tpu.memory_space<vmem>>, vector<1x96xf32>
    %61 = arith.addf %59, %60 : vector<1x96xf32>
    %cst_56 = arith.constant 0.000000e+00 : f32
    %62 = vector.broadcast %cst_56 : f32 to vector<1x96xf32>
    %63 = arith.maximumf %61, %62 : vector<1x96xf32>
    %c0_57 = arith.constant 0 : index
    %c0_58 = arith.constant 0 : index
    %64 = vector.load %arg8[%c0_57, %c0_58] : memref<96x128xf32, #tpu.memory_space<vmem>>, vector<96x128xf32>
    %cst_59 = arith.constant dense<0.000000e+00> : vector<1x128xf32>
    %65 = tpu.matmul %63, %64, %cst_59 {dimension_numbers = #tpu.dot_dimension_numbers<[1], [0], [0], [1], [0, 0, 1, 1], [], []>} : vector<1x96xf32>, vector<96x128xf32>, vector<1x128xf32> -> vector<1x128xf32>
    %c0_60 = arith.constant 0 : index
    %c0_61 = arith.constant 0 : index
    %66 = vector.load %arg9[%c0_60, %c0_61] : memref<1x128xf32, #tpu.memory_space<vmem>>, vector<1x128xf32>
    %67 = arith.addf %65, %66 : vector<1x128xf32>
    %c0_62 = arith.constant 0 : index
    %c0_63 = arith.constant 0 : index
    %c0_64 = arith.constant 0 : index
    %68 = vector.load %arg10[%c0_62, %c0_63, %c0_64] : memref<1x1x128xf32, #tpu.memory_space<vmem>>, vector<1x1x128xf32>
    %69 = vector.shape_cast %68 : vector<1x1x128xf32> to vector<1x128xf32>
    %70 = vector.shape_cast %67 : vector<1x128xf32> to vector<1x1x128xf32>
    tpu.vector_store %arg10[%c0_62, %c0_63, %c0_64], %70 {strides = array<i32>} : memref<1x1x128xf32, #tpu.memory_space<vmem>>, vector<1x1x128xf32>,
    return
  }
  func.func @transform_0(%arg0: i32) -> (i32, i32, i32) {
    %c0_i32 = arith.constant 0 : i32
    %c0_i32_0 = arith.constant 0 : i32
    %c0_i32_1 = arith.constant 0 : i32
    return %arg0, %c0_i32, %c0_i32_0 : i32, i32, i32
  }
  func.func @transform_1(%arg0: i32) -> (i32, i32, i32) {
    %c0_i32 = arith.constant 0 : i32
    %c0_i32_0 = arith.constant 0 : i32
    %c0_i32_1 = arith.constant 0 : i32
    return %arg0, %c0_i32, %c0_i32_0 : i32, i32, i32
  }
  func.func @transform_2(%arg0: i32) -> (i32, i32) {
    %c0_i32 = arith.constant 0 : i32
    %c0_i32_0 = arith.constant 0 : i32
    %c0_i32_1 = arith.constant 0 : i32
    return %c0_i32, %c0_i32_0 : i32, i32
  }
  func.func @transform_3(%arg0: i32) -> (i32, i32, i32) {
    %c0_i32 = arith.constant 0 : i32
    %c0_i32_0 = arith.constant 0 : i32
    %c0_i32_1 = arith.constant 0 : i32
    %c0_i32_2 = arith.constant 0 : i32
    return %c0_i32, %c0_i32_0, %c0_i32_1 : i32, i32, i32
  }
  func.func @transform_4(%arg0: i32) -> (i32, i32) {
    %c0_i32 = arith.constant 0 : i32
    %c0_i32_0 = arith.constant 0 : i32
    %c0_i32_1 = arith.constant 0 : i32
    return %c0_i32, %c0_i32_0 : i32, i32
  }
  func.func @transform_5(%arg0: i32) -> (i32, i32, i32) {
    %c0_i32 = arith.constant 0 : i32
    %c0_i32_0 = arith.constant 0 : i32
    %c0_i32_1 = arith.constant 0 : i32
    %c0_i32_2 = arith.constant 0 : i32
    return %c0_i32, %c0_i32_0, %c0_i32_1 : i32, i32, i32
  }
  func.func @transform_6(%arg0: i32) -> (i32, i32) {
    %c0_i32 = arith.constant 0 : i32
    %c0_i32_0 = arith.constant 0 : i32
    %c0_i32_1 = arith.constant 0 : i32
    return %c0_i32, %c0_i32_0 : i32, i32
  }
  func.func @transform_7(%arg0: i32) -> (i32, i32) {
    %c0_i32 = arith.constant 0 : i32
    %c0_i32_0 = arith.constant 0 : i32
    %c0_i32_1 = arith.constant 0 : i32
    return %c0_i32, %c0_i32_0 : i32, i32
  }
  func.func @transform_8(%arg0: i32) -> (i32, i32) {
    %c0_i32 = arith.constant 0 : i32
    %c0_i32_0 = arith.constant 0 : i32
    %c0_i32_1 = arith.constant 0 : i32
    return %c0_i32, %c0_i32_0 : i32, i32
  }
  func.func @transform_9(%arg0: i32) -> (i32, i32, i32) {
    %c0_i32 = arith.constant 0 : i32
    %c0_i32_0 = arith.constant 0 : i32
    %c0_i32_1 = arith.constant 0 : i32
    return %arg0, %c0_i32, %c0_i32_0 : i32, i32, i32
  }
}

</mosaic_0001>

<llo_original>
// kernel: tpu_custom_call.1
$region0: #{tpu_custom_call.1}
  #allocation0 [shape = 'u32[]', space=smem, size = 0x4, offset = 0x4, fixed_abs, tag = 'smem constant byte address 0x4 - core index']
  #allocation1 [shape = 'u32[144,128]{1,0:T(1,128)}', space=vmem, size = 0x12000, scoped, tag = 'internal scratch']
  %s0 = inlined_call_operand.vmem [shape: f32[4,16,8], index: 0, kind: input, shape index: {}]
  %s1 = inlined_call_operand.hbm [shape: f32[4,16,16], index: 1, kind: input, shape index: {}]
  %s2 = inlined_call_operand.vmem [shape: f32[8,32], index: 2, kind: input, shape index: {}]
  %s3 = inlined_call_operand.hbm [shape: f32[5,32,32], index: 3, kind: input, shape index: {}]
  %s4 = inlined_call_operand.hbm [shape: f32[3,32], index: 4, kind: input, shape index: {}]
  %s5 = inlined_call_operand.vmem [shape: f32[3,32,96], index: 5, kind: input, shape index: {}]
  %s6 = inlined_call_operand.vmem [shape: f32[1,96], index: 6, kind: input, shape index: {}]
  %s7 = inlined_call_operand.hbm [shape: f32[96,128], index: 7, kind: input, shape index: {}]
  %s8 = inlined_call_operand.vmem [shape: f32[1,128], index: 8, kind: input, shape index: {}]
  %s9 = inlined_call_operand.hbm [shape: f32[4,1,128], index: 9, kind: output, shape index: {}]
  %s10 = sld [smem:[#allocation0]]
  $region85: #{tpu_custom_call.1} parent=0
    _
  %s12 = ssub.s32 1, %s10
  %s13 = scalar_select 0, %s12, %s10
  $region1: #{tpu_custom_call.1} parent=0
    #allocation2 [shape = 'u8[16384]{0}', space=vmem, size = 0x4000, scoped, tag = 'input window, operand 1']
    #allocation3 [shape = 's32[2]{0}', space=sflag, size = 0x8, scoped, tag = 'scoped memory for tpu_custom_call.1']
    #allocation4 [shape = 's32[2]{0}', space=sflag, size = 0x8, scoped, tag = 'scoped memory for tpu_custom_call.1']
    #allocation5 [shape = 'u8[81920]{0}', space=vmem, size = 0x14000, scoped, tag = 'input window, operand 3, single buffered']
    #allocation6 [shape = 's32[1]{0}', space=sflag, size = 0x4, scoped, tag = 'scoped memory for tpu_custom_call.1']
    #allocation7 [shape = 'u8[2048]{0}', space=vmem, size = 0x800, scoped, tag = 'input window, operand 4, single buffered']
    #allocation8 [shape = 'u8[49152]{0}', space=vmem, size = 0xc000, scoped, tag = 'input window, operand 7, single buffered']
    #allocation9 [shape = 's32[1]{0}', space=sflag, size = 0x4, scoped, tag = 'scoped memory for tpu_custom_call.1']
    #allocation10 [shape = 'u8[1024]{0}', space=vmem, size = 0x400, scoped, tag = 'output window, operand 0']
    %14 = vsyncpa [#allocation3], 0
    %s15 = scalar_lea.sflag [#allocation3], 1
    %16 = vsyncpa %s15, 0
    %17 = vsyncpa [#allocation6], 0
    %18 = vsyncpa [#allocation9], 0
    %19 = vsyncpa [#allocation4], 0
    %s20 = scalar_lea.sflag [#allocation4], 1
    %21 = vsyncpa %s20, 0
    loop: start=0, step=1, limit=6
    $region2: #{tpu_custom_call.1} parent=1 // loop_pre_header
      _
    $region3: #{tpu_custom_call.1} parent=1 // loop_header
      %s23 = sphi 0, %s27
      %p24 = scmp.ge.s32.totalorder %s23, 6
      %s33 = sphi 0, %s35
      %s36 = sphi 0, %s33
      %s37 = sphi 0, %s36
      %s53 = sphi 0, %s37
      %s59 = sphi 0, %s61
      %s62 = sphi 0, %s59
      %s63 = sphi 0, %s62
      %s79 = sphi 0, %s63
      %s83 = sphi 0, %s83
      %s85 = sphi 0, %s83
      %s86 = sphi 0, %s85
      %s100 = sphi 0, %s86
      %s104 = sphi 0, %s104
      %s106 = sphi 0, %s104
      %s107 = sphi 0, %s106
      %s121 = sphi 0, %s107
      %s125 = sphi 0, %s125
      %s127 = sphi 0, %s125
      %s128 = sphi 0, %s127
      %s142 = sphi 0, %s128
      %s146 = sphi 0, %s146
      %s148 = sphi 0, %s146
      %s149 = sphi 0, %s148
      %s163 = sphi 0, %s149
      %s167 = sphi 0, %s167
      %s169 = sphi 0, %s167
      %s170 = sphi 0, %s169
      %s184 = sphi 0, %s170
      %s188 = sphi 0, %s188
      %s190 = sphi 0, %s188
      %s191 = sphi 0, %s190
      %s205 = sphi 0, %s191
      %s209 = sphi 0, %s209
      %s211 = sphi 0, %s209
      %s212 = sphi 0, %s211
      %s226 = sphi 0, %s212
      %s232 = sphi 0, %s234
      %s235 = sphi 0, %s232
      %s236 = sphi 0, %s235
      %s252 = sphi 0, %s236
    $region4: #{tpu_custom_call.1} parent=1 // loop_header_branch
      %26 = sbr.rel (%p24) target = $region8
    $region5: #{tpu_custom_call.1} parent=1 // loop_body
      %s28 = ssub.s32 %s23, 1
      %s29 = ssub.s32 %s23, 2
      %s30 = sadd.s32 %s23, 1
      %s31 = ssub.s32 %s23, %s30
      %p32 = scmp.eq.s32.totalorder %s31, 0
      %s34 = sadd.s32 %s33, 1
      %s35 = scalar_select %p32, %s33, %s34
      %p38 = pneg %p32
      %p39 = scmp.eq.s32.totalorder %s23, 3
      %p40 = por %p38, %p39
      %p41 = scmp.ne.s32.totalorder %s33, %s36
      %p42 = scmp.eq.s32.totalorder %s23, 0
      %p43 = por %p41, %p42
      %p44 = scmp.ne.s32.totalorder %s33, %s36
      %p45 = scmp.eq.s32.totalorder %s28, 3
      %p46 = por %p44, %p45
      %p47 = scmp.ne.s32.totalorder %s36, %s37
      %p48 = scmp.eq.s32.totalorder %s28, 0
      %p49 = por %p47, %p48
      %p50 = scmp.ne.s32.totalorder %s36, %s37
      %p51 = scmp.eq.s32.totalorder %s29, 3
      %p52 = por %p50, %p51
      %p54 = scmp.ne.s32.totalorder %s37, %s53
      %p55 = scmp.eq.s32.totalorder %s29, 0
      %p56 = por %p54, %p55
      %s57 = ssub.s32 %s23, %s30
      %p58 = scmp.eq.s32.totalorder %s57, 0
      %s60 = sadd.s32 %s59, 1
      %s61 = scalar_select %p58, %s59, %s60
      %p64 = pneg %p58
      %p65 = scmp.eq.s32.totalorder %s23, 3
      %p66 = por %p64, %p65
      %p67 = scmp.ne.s32.totalorder %s59, %s62
      %p68 = scmp.eq.s32.totalorder %s23, 0
      %p69 = por %p67, %p68
      %p70 = scmp.ne.s32.totalorder %s59, %s62
      %p71 = scmp.eq.s32.totalorder %s28, 3
      %p72 = por %p70, %p71
      %p73 = scmp.ne.s32.totalorder %s62, %s63
      %p74 = scmp.eq.s32.totalorder %s28, 0
      %p75 = por %p73, %p74
      %p76 = scmp.ne.s32.totalorder %s62, %s63
      %p77 = scmp.eq.s32.totalorder %s29, 3
      %p78 = por %p76, %p77
      %p80 = scmp.ne.s32.totalorder %s63, %s79
      %p81 = scmp.eq.s32.totalorder %s29, 0
      %p82 = por %p80, %p81
      %s84 = sadd.s32 %s83, 1
      %p87 = scmp.eq.s32.totalorder %s23, 3
      %p88 = scmp.ne.s32.totalorder %s83, %s85
      %p89 = scmp.eq.s32.totalorder %s23, 0
      %p90 = por %p88, %p89
      %p91 = scmp.ne.s32.totalorder %s83, %s85
      %p92 = scmp.eq.s32.totalorder %s28, 3
      %p93 = por %p91, %p92
      %p94 = scmp.ne.s32.totalorder %s85, %s86
      %p95 = scmp.eq.s32.totalorder %s28, 0
      %p96 = por %p94, %p95
      %p97 = scmp.ne.s32.totalorder %s85, %s86
      %p98 = scmp.eq.s32.totalorder %s29, 3
      %p99 = por %p97, %p98
      %p101 = scmp.ne.s32.totalorder %s86, %s100
      %p102 = scmp.eq.s32.totalorder %s29, 0
      %p103 = por %p101, %p102
      %s105 = sadd.s32 %s104, 1
      %p108 = scmp.eq.s32.totalorder %s23, 3
      %p109 = scmp.ne.s32.totalorder %s104, %s106
      %p110 = scmp.eq.s32.totalorder %s23, 0
      %p111 = por %p109, %p110
      %p112 = scmp.ne.s32.totalorder %s104, %s106
      %p113 = scmp.eq.s32.totalorder %s28, 3
      %p114 = por %p112, %p113
      %p115 = scmp.ne.s32.totalorder %s106, %s107
      %p116 = scmp.eq.s32.totalorder %s28, 0
      %p117 = por %p115, %p116
      %p118 = scmp.ne.s32.totalorder %s106, %s107
      %p119 = scmp.eq.s32.totalorder %s29, 3
      %p120 = por %p118, %p119
      %p122 = scmp.ne.s32.totalorder %s107, %s121
      %p123 = scmp.eq.s32.totalorder %s29, 0
      %p124 = por %p122, %p123
      %s126 = sadd.s32 %s125, 1
      %p129 = scmp.eq.s32.totalorder %s23, 3
      %p130 = scmp.ne.s32.totalorder %s125, %s127
      %p131 = scmp.eq.s32.totalorder %s23, 0
      %p132 = por %p130, %p131
      %p133 = scmp.ne.s32.totalorder %s125, %s127
      %p134 = scmp.eq.s32.totalorder %s28, 3
      %p135 = por %p133, %p134
      %p136 = scmp.ne.s32.totalorder %s127, %s128
      %p137 = scmp.eq.s32.totalorder %s28, 0
      %p138 = por %p136, %p137
      %p139 = scmp.ne.s32.totalorder %s127, %s128
      %p140 = scmp.eq.s32.totalorder %s29, 3
      %p141 = por %p139, %p140
      %p143 = scmp.ne.s32.totalorder %s128, %s142
      %p144 = scmp.eq.s32.totalorder %s29, 0
      %p145 = por %p143, %p144
      %s147 = sadd.s32 %s146, 1
      %p150 = scmp.eq.s32.totalorder %s23, 3
      %p151 = scmp.ne.s32.totalorder %s146, %s148
      %p152 = scmp.eq.s32.totalorder %s23, 0
      %p153 = por %p151, %p152
      %p154 = scmp.ne.s32.totalorder %s146, %s148
      %p155 = scmp.eq.s32.totalorder %s28, 3
      %p156 = por %p154, %p155
      %p157 = scmp.ne.s32.totalorder %s148, %s149
      %p158 = scmp.eq.s32.totalorder %s28, 0
      %p159 = por %p157, %p158
      %p160 = scmp.ne.s32.totalorder %s148, %s149
      %p161 = scmp.eq.s32.totalorder %s29, 3
      %p162 = por %p160, %p161
      %p164 = scmp.ne.s32.totalorder %s149, %s163
      %p165 = scmp.eq.s32.totalorder %s29, 0
      %p166 = por %p164, %p165
      %s168 = sadd.s32 %s167, 1
      %p171 = scmp.eq.s32.totalorder %s23, 3
      %p172 = scmp.ne.s32.totalorder %s167, %s169
      %p173 = scmp.eq.s32.totalorder %s23, 0
      %p174 = por %p172, %p173
      %p175 = scmp.ne.s32.totalorder %s167, %s169
      %p176 = scmp.eq.s32.totalorder %s28, 3
      %p177 = por %p175, %p176
      %p178 = scmp.ne.s32.totalorder %s169, %s170
      %p179 = scmp.eq.s32.totalorder %s28, 0
      %p180 = por %p178, %p179
      %p181 = scmp.ne.s32.totalorder %s169, %s170
      %p182 = scmp.eq.s32.totalorder %s29, 3
      %p183 = por %p181, %p182
      %p185 = scmp.ne.s32.totalorder %s170, %s184
      %p186 = scmp.eq.s32.totalorder %s29, 0
      %p187 = por %p185, %p186
      %s189 = sadd.s32 %s188, 1
      %p192 = scmp.eq.s32.totalorder %s23, 3
      %p193 = scmp.ne.s32.totalorder %s188, %s190
      %p194 = scmp.eq.s32.totalorder %s23, 0
      %p195 = por %p193, %p194
      %p196 = scmp.ne.s32.totalorder %s188, %s190
      %p197 = scmp.eq.s32.totalorder %s28, 3
      %p198 = por %p196, %p197
      %p199 = scmp.ne.s32.totalorder %s190, %s191
      %p200 = scmp.eq.s32.totalorder %s28, 0
      %p201 = por %p199, %p200
      %p202 = scmp.ne.s32.totalorder %s190, %s191
      %p203 = scmp.eq.s32.totalorder %s29, 3
      %p204 = por %p202, %p203
      %p206 = scmp.ne.s32.totalorder %s191, %s205
      %p207 = scmp.eq.s32.totalorder %s29, 0
      %p208 = por %p206, %p207
      %s210 = sadd.s32 %s209, 1
      %p213 = scmp.eq.s32.totalorder %s23, 3
      %p214 = scmp.ne.s32.totalorder %s209, %s211
      %p215 = scmp.eq.s32.totalorder %s23, 0
      %p216 = por %p214, %p215
      %p217 = scmp.ne.s32.totalorder %s209, %s211
      %p218 = scmp.eq.s32.totalorder %s28, 3
      %p219 = por %p217, %p218
      %p220 = scmp.ne.s32.totalorder %s211, %s212
      %p221 = scmp.eq.s32.totalorder %s28, 0
      %p222 = por %p220, %p221
      %p223 = scmp.ne.s32.totalorder %s211, %s212
      %p224 = scmp.eq.s32.totalorder %s29, 3
      %p225 = por %p223, %p224
      %p227 = scmp.ne.s32.totalorder %s212, %s226
      %p228 = scmp.eq.s32.totalorder %s29, 0
      %p229 = por %p227, %p228
      %s230 = ssub.s32 %s23, %s30
      %p231 = scmp.eq.s32.totalorder %s230, 0
      %s233 = sadd.s32 %s232, 1
      %s234 = scalar_select %p231, %s232, %s233
      %p237 = pneg %p231
      %p238 = scmp.eq.s32.totalorder %s23, 3
      %p239 = por %p237, %p238
      %p240 = scmp.ne.s32.totalorder %s232, %s235
      %p241 = scmp.eq.s32.totalorder %s23, 0
      %p242 = por %p240, %p241
      %p243 = scmp.ne.s32.totalorder %s232, %s235
      %p244 = scmp.eq.s32.totalorder %s28, 3
      %p245 = por %p243, %p244
      %p246 = scmp.ne.s32.totalorder %s235, %s236
      %p247 = scmp.eq.s32.totalorder %s28, 0
      %p248 = por %p246, %p247
      %p249 = scmp.ne.s32.totalorder %s235, %s236
      %p250 = scmp.eq.s32.totalorder %s29, 3
      %p251 = por %p249, %p250
      %p253 = scmp.ne.s32.totalorder %s236, %s252
      %p254 = scmp.eq.s32.totalorder %s29, 0
      %p255 = por %p253, %p254
      %p256 = scmp.le.s32.totalorder 1, %s23
      %p257 = scmp.lt.s32.totalorder %s23, 5
      %p258 = pnand %p256, %p257
      %p259 = pneg %p258
      // Predicated region
      $region9: #{tpu_custom_call.1} parent=5 // pred_check
        _
      $region10: #{tpu_custom_call.1} parent=5 // pred_check_branch
        %261 = sbr.rel (%p258) target = $region12
      $region11: #{tpu_custom_call.1} parent=5 // pred_region
        %s262 = ssub.s32 %s23, 1
        // Predicated region
        $region13: #{tpu_custom_call.1} parent=11 // pred_check
          %p263 = pneg %p96
        $region14: #{tpu_custom_call.1} parent=11 // pred_check_branch
          %265 = sbr.rel (%p263) target = $region16
        $region15: #{tpu_custom_call.1} parent=11 // pred_region
          _
        $region16: #{tpu_custom_call.1} parent=11 // pred_fallthru
          _
        // Predicated region
        $region17: #{tpu_custom_call.1} parent=11 // pred_check
          %p266 = pneg %p117
        $region18: #{tpu_custom_call.1} parent=11 // pred_check_branch
          %268 = sbr.rel (%p266) target = $region20
        $region19: #{tpu_custom_call.1} parent=11 // pred_region
          %s270 = ssub.s32 2560, 2560
          %271 = vsyncadd [#allocation6], %s270
          %s272 = sshll.u32 [#allocation5], 4
          %s273 = int_to_ptr.vmem [resolvable:$true] %s272
          %278 = dma.hbm_to_vmem [thread:$0]  %s3, 2560, %s273, [#allocation6], 128, 128, 8
        $region20: #{tpu_custom_call.1} parent=11 // pred_fallthru
          _
        // Predicated region
        $region21: #{tpu_custom_call.1} parent=11 // pred_check
          %p279 = pneg %p138
        $region22: #{tpu_custom_call.1} parent=11 // pred_check_branch
          %281 = sbr.rel (%p279) target = $region24
        $region23: #{tpu_custom_call.1} parent=11 // pred_region
          %s283 = ssub.s32 64, 64
          %284 = vsyncadd [#allocation6], %s283
          %s286 = sshll.u32 [#allocation7], 4
          %s287 = int_to_ptr.vmem [resolvable:$true] %s286
          %289 = dma.hbm_to_vmem [thread:$0]  %s4, 64, %s287, [#allocation6]
        $region24: #{tpu_custom_call.1} parent=11 // pred_fallthru
          _
        // Predicated region
        $region25: #{tpu_custom_call.1} parent=11 // pred_check
          %p290 = pneg %p159
        $region26: #{tpu_custom_call.1} parent=11 // pred_check_branch
          %292 = sbr.rel (%p290) target = $region28
        $region27: #{tpu_custom_call.1} parent=11 // pred_region
          _
        $region28: #{tpu_custom_call.1} parent=11 // pred_fallthru
          _
        // Predicated region
        $region29: #{tpu_custom_call.1} parent=11 // pred_check
          %p293 = pneg %p180
        $region30: #{tpu_custom_call.1} parent=11 // pred_check_branch
          %295 = sbr.rel (%p293) target = $region32
        $region31: #{tpu_custom_call.1} parent=11 // pred_region
          _
        $region32: #{tpu_custom_call.1} parent=11 // pred_fallthru
          _
        // Predicated region
        $region33: #{tpu_custom_call.1} parent=11 // pred_check
          %p296 = pneg %p201
        $region34: #{tpu_custom_call.1} parent=11 // pred_check_branch
          %298 = sbr.rel (%p296) target = $region36
        $region35: #{tpu_custom_call.1} parent=11 // pred_region
          %s300 = ssub.s32 1536, 1536
          %301 = vsyncadd [#allocation9], %s300
          %s302 = sshll.u32 [#allocation8], 4
          %s303 = int_to_ptr.vmem [resolvable:$true] %s302
          %308 = dma.hbm_to_vmem [thread:$0]  %s7, 1536, %s303, [#allocation9], 128, 128, 8
        $region36: #{tpu_custom_call.1} parent=11 // pred_fallthru
          _
        // Predicated region
        $region37: #{tpu_custom_call.1} parent=11 // pred_check
          %p309 = pneg %p222
        $region38: #{tpu_custom_call.1} parent=11 // pred_check_branch
          %311 = sbr.rel (%p309) target = $region40
        $region39: #{tpu_custom_call.1} parent=11 // pred_region
          _
        $region40: #{tpu_custom_call.1} parent=11 // pred_fallthru
          _
      $region12: #{tpu_custom_call.1} parent=5 // pred_fallthru
        _
      %p312 = scmp.lt.s32.totalorder %s23, 4
      // Predicated region
      $region41: #{tpu_custom_call.1} parent=5 // pred_check
        %p313 = pneg %p312
      $region42: #{tpu_custom_call.1} parent=5 // pred_check_branch
        %315 = sbr.rel (%p313) target = $region44
      $region43: #{tpu_custom_call.1} parent=5 // pred_region
        // Predicated region
        $region45: #{tpu_custom_call.1} parent=43 // pred_check
          %p316 = pneg %p43
        $region46: #{tpu_custom_call.1} parent=43 // pred_check_branch
          %318 = sbr.rel (%p316) target = $region48
        $region47: #{tpu_custom_call.1} parent=43 // pred_region
          %p319 = scmp.lt.s32.totalorder %s23, 3
          %s320 = scalar_select %p319, %s23, 3
          %s321 = smul.addr %s320, 2
          %s322 = smul.addr %s321, 8
          %s323 = scalar_lea.vmem %s0, %s322
        $region48: #{tpu_custom_call.1} parent=43 // pred_fallthru
          _
        // Predicated region
        $region49: #{tpu_custom_call.1} parent=43 // pred_check
          %p324 = pneg %p69
        $region50: #{tpu_custom_call.1} parent=43 // pred_check_branch
          %326 = sbr.rel (%p324) target = $region52
        $region51: #{tpu_custom_call.1} parent=43 // pred_region
          %s327 = sand.u32 %s59, 1
          %s328 = scalar_lea.sflag [#allocation3], %s327
          %s329 = sand.u32 %s59, 1
          %s330 = smul.addr %s329, 16
          %s331 = scalar_lea.vmem [#allocation2], %s330
          %s333 = ssub.s32 256, 256
          %334 = vsyncadd %s328, %s333
          %s335 = smul.addr %s23, 2
          %s336 = smul.addr %s335, 128
          %s337 = scalar_lea.hbm %s1, %s336
          %s338 = sshll.u32 %s331, 4
          %s339 = int_to_ptr.vmem [resolvable:$true] %s338
          %344 = dma.hbm_to_vmem [thread:$0]  %s337, 256, %s339, %s328, 128, 128, 8
        $region52: #{tpu_custom_call.1} parent=43 // pred_fallthru
          _
      $region44: #{tpu_custom_call.1} parent=5 // pred_fallthru
        _
      %p345 = scmp.le.s32.totalorder 1, %s23
      %p346 = scmp.lt.s32.totalorder %s23, 5
      %p347 = pnand %p345, %p346
      %p348 = pneg %p347
      // Predicated region
      $region53: #{tpu_custom_call.1} parent=5 // pred_check
        _
      $region54: #{tpu_custom_call.1} parent=5 // pred_check_branch
        %350 = sbr.rel (%p347) target = $region56
      $region55: #{tpu_custom_call.1} parent=5 // pred_region
        %s351 = ssub.s32 %s23, 1
        %s352 = sand.u32 %s62, 1
        %s353 = scalar_lea.sflag [#allocation3], %s352
        %s354 = sand.u32 %s62, 1
        %s355 = smul.addr %s354, 16
        %s356 = scalar_lea.vmem [#allocation2], %s355
        // Predicated region
        $region57: #{tpu_custom_call.1} parent=55 // pred_check
          %p357 = pneg %p75
        $region58: #{tpu_custom_call.1} parent=55 // pred_check_branch
          %359 = sbr.rel (%p357) target = $region60
        $region59: #{tpu_custom_call.1} parent=55 // pred_region
          %360 = dma.done %s353, 256
        $region60: #{tpu_custom_call.1} parent=55 // pred_fallthru
          _
        // Predicated region
        $region61: #{tpu_custom_call.1} parent=55 // pred_check
          %p361 = pneg %p117
        $region62: #{tpu_custom_call.1} parent=55 // pred_check_branch
          %363 = sbr.rel (%p361) target = $region64
        $region63: #{tpu_custom_call.1} parent=55 // pred_region
          %364 = dma.done [#allocation6], 2560
        $region64: #{tpu_custom_call.1} parent=55 // pred_fallthru
          _
        // Predicated region
        $region65: #{tpu_custom_call.1} parent=55 // pred_check
          %p365 = pneg %p138
        $region66: #{tpu_custom_call.1} parent=55 // pred_check_branch
          %367 = sbr.rel (%p365) target = $region68
        $region67: #{tpu_custom_call.1} parent=55 // pred_region
          %368 = dma.done [#allocation6], 64
        $region68: #{tpu_custom_call.1} parent=55 // pred_fallthru
          _
        // Predicated region
        $region69: #{tpu_custom_call.1} parent=55 // pred_check
          %p369 = pneg %p201
        $region70: #{tpu_custom_call.1} parent=55 // pred_check_branch
          %371 = sbr.rel (%p369) target = $region72
        $region71: #{tpu_custom_call.1} parent=55 // pred_region
          %372 = dma.done [#allocation9], 1536
        $region72: #{tpu_custom_call.1} parent=55 // pred_fallthru
          _
        %p373 = scmp.lt.s32.totalorder %s28, 3
        %s374 = scalar_select %p373, %s28, 3
        %s375 = smul.addr %s374, 2
        %s376 = smul.addr %s375, 8
        %s377 = scalar_lea.vmem %s0, %s376
        %p378 = pneg %p49
        %p379 = pneg %p46
        %s380 = sand.u32 %s62, 1
        %s381 = scalar_lea.sflag [#allocation3], %s380
        %s382 = sand.u32 %s62, 1
        %s383 = smul.addr %s382, 16
        %s384 = scalar_lea.vmem [#allocation2], %s383
        %p385 = pneg %p75
        %p386 = pneg %p72
        %p387 = pneg %p96
        %p388 = pneg %p93
        %p389 = pneg %p117
        %p390 = pneg %p114
        %p391 = pneg %p138
        %p392 = pneg %p135
        %p393 = pneg %p159
        %p394 = pneg %p156
        %p395 = pneg %p180
        %p396 = pneg %p177
        %p397 = pneg %p201
        %p398 = pneg %p198
        %p399 = pneg %p222
        %p400 = pneg %p219
        %p401 = pneg %p248
        %p402 = pneg %p245
        %s403 = sand.u32 %s235, 1
        %s404 = scalar_lea.sflag [#allocation4], %s403
        %s405 = sand.u32 %s235, 1
        %s406 = scalar_lea.vmem [#allocation10], %s405
        %p407 = scmp.lt.s32.totalorder %s28, 3
        %s408 = scalar_select %p407, %s28, 3
        %s409 = smul.addr %s408, 2
        %s410 = smul.addr %s409, 8
        %s411 = scalar_lea.vmem %s0, %s410
        %v412 = vld [vmem:[%s411] sm:$0xff]
        %v413 = vld [vmem:[%s411 + $0x8] sm:$0xff]
        %v414 = vld [vmem:[%s356] sm:$0xff]
        %v415 = vld [vmem:[%s356 + $0x8] sm:$0xff]
        %v416 = vld [vmem:[%s2] sm:$0xff]
        %v417 = vld [vmem:[#allocation7] sm:$0x1]
        %v418 = vld [vmem:[#allocation5] sm:$0xff]
        %v419 = vld [vmem:[#allocation5 + $0x8] sm:$0xff]
        %v420 = vld [vmem:[#allocation5 + $0x10] sm:$0xff]
        %v421 = vld [vmem:[#allocation5 + $0x18] sm:$0xff]
        %vm422 = vcmask 130048
        %v424 = vsel %vm422, %v414, 0
        %v427 = vsel %vm422, %v415, 0
        %429 = vmatprep.subr.mxu0 0.0
        %430 = vmatpush1.msra.mxu0 0.0
        %431 = vmatprep.subr.mxu0 0.0
        %432 = vmatpush1.msra.mxu0 0.0
        %433 = vmatprep.subr.mxu0 0.0
        %434 = vmatpush1.msra.mxu0 0.0
        %435 = vmatprep.subr.mxu0 0.0
        %436 = vmatpush1.msra.mxu0 0.0
        %437 = vmatprep.subr.mxu0 0.0
        %438 = vmatpush1.msra.mxu0 0.0
        %439 = vmatprep.subr.mxu0 0.0
        %440 = vmatpush1.msra.mxu0 0.0
        %441 = vmatprep.subr.mxu0 0.0
        %442 = vmatpush1.msra.mxu0 0.0
        %443 = vmatprep.subr.mxu0 0.0
        %444 = vmatpush1.msra.mxu0 0.0
        %445 = vmatprep.subr.mxu0 0.0
        %446 = vmatpush1.msra.mxu0 0.0
        %447 = vmatprep.subr.mxu0 0.0
        %448 = vmatpush1.msra.mxu0 0.0
        %449 = vmatprep.subr.mxu0 0.0
        %450 = vmatpush1.msra.mxu0 0.0
        %451 = vmatprep.subr.mxu0 0.0
        %452 = vmatpush1.msra.mxu0 0.0
        %453 = vmatprep.subr.mxu0 0.0
        %454 = vmatpush1.msra.mxu0 0.0
        %455 = vmatprep.subr.mxu0 0.0
        %456 = vmatpush1.msra.mxu0 0.0
        %457 = vmatprep.subr.mxu0 0.0
        %458 = vmatpush1.msra.mxu0 %v413
        %459 = vmatprep.subr.mxu0 0.0
        %460 = vmatpush1.msra.mxu0 %v412
        %461 = vmatprep.subr.mxu0 0.0
        %462 = vmatpush2.msra.mxu0 0.0
        %463 = vmatprep.subr.mxu0 0.0
        %464 = vmatpush2.msra.mxu0 0.0
        %465 = vmatprep.subr.mxu0 0.0
        %466 = vmatpush2.msra.mxu0 0.0
        %467 = vmatprep.subr.mxu0 0.0
        %468 = vmatpush2.msra.mxu0 0.0
        %469 = vmatprep.subr.mxu0 0.0
        %470 = vmatpush2.msra.mxu0 0.0
        %471 = vmatprep.subr.mxu0 0.0
        %472 = vmatpush2.msra.mxu0 0.0
        %473 = vmatprep.subr.mxu0 0.0
        %474 = vmatpush2.msra.mxu0 0.0
        %475 = vmatprep.subr.mxu0 0.0
        %476 = vmatpush2.msra.mxu0 0.0
        %477 = vmatprep.subr.mxu0 0.0
        %478 = vmatpush2.msra.mxu0 0.0
        %479 = vmatprep.subr.mxu0 0.0
        %480 = vmatpush2.msra.mxu0 0.0
        %481 = vmatprep.subr.mxu0 0.0
        %482 = vmatpush2.msra.mxu0 0.0
        %483 = vmatprep.subr.mxu0 0.0
        %484 = vmatpush2.msra.mxu0 0.0
        %485 = vmatprep.subr.mxu0 0.0
        %486 = vmatpush2.msra.mxu0 0.0
        %487 = vmatprep.subr.mxu0 0.0
        %488 = vmatpush2.msra.mxu0 0.0
        %489 = vmatprep.subr.mxu0 0.0
        %490 = vmatpush2.msra.mxu0 0.0
        %491 = vmatprep.subr.mxu0 0.0
        %492 = vmatpush2.msra.mxu0 0.0
        %493 = vmatprep.mubr.f32.mxu0 0.0
        %494 = vmatmul.mubr.f32.gmra.mxu0 %v424
        %v495 = vpop.f32.mrf.mxu0
        %v496 = vadd.f32 0.0, %v495
        %v497 = vpop.f32.mrf.mxu0
        %498 = vmatprep.mubr.f32.mxu0 0.0
        %499 = vmatmul.mubr.f32.gmra.mxu0 %v427
        %v500 = vpop.f32.mrf.mxu0
        %v501 = vadd.f32 0.0, %v500
        %v502 = vpop.f32.mrf.mxu0
        %503 = vdwg.mxu0
        %v504 = vlaneseq
        %v505 = vshrl.u32 %v504, 7
        %v506 = vsub.s32 0, %v505
        %v507 = vrot.slane %v417, %v506
        %vm508 = vcmask 64512
        %v510 = vsel %vm508, %v496, 0
        %v513 = vsel %vm508, %v501, 0
        %515 = vmatprep.subr.mxu0 0.0
        %516 = vmatpush1.msra.mxu0 0.0
        %517 = vmatprep.subr.mxu0 0.0
        %518 = vmatpush1.msra.mxu0 0.0
        %519 = vmatprep.subr.mxu0 0.0
        %520 = vmatpush1.msra.mxu0 0.0
        %521 = vmatprep.subr.mxu0 0.0
        %522 = vmatpush1.msra.mxu0 0.0
        %523 = vmatprep.subr.mxu0 0.0
        %524 = vmatpush1.msra.mxu0 0.0
        %525 = vmatprep.subr.mxu0 0.0
        %526 = vmatpush1.msra.mxu0 0.0
        %527 = vmatprep.subr.mxu0 0.0
        %528 = vmatpush1.msra.mxu0 0.0
        %529 = vmatprep.subr.mxu0 0.0
        %530 = vmatpush1.msra.mxu0 0.0
        %531 = vmatprep.subr.mxu0 0.0
        %532 = vmatpush1.msra.mxu0 0.0
        %533 = vmatprep.subr.mxu0 0.0
        %534 = vmatpush1.msra.mxu0 0.0
        %535 = vmatprep.subr.mxu0 0.0
        %536 = vmatpush1.msra.mxu0 0.0
        %537 = vmatprep.subr.mxu0 0.0
        %538 = vmatpush1.msra.mxu0 0.0
        %539 = vmatprep.subr.mxu0 0.0
        %540 = vmatpush1.msra.mxu0 0.0
        %541 = vmatprep.subr.mxu0 0.0
        %542 = vmatpush1.msra.mxu0 0.0
        %543 = vmatprep.subr.mxu0 0.0
        %544 = vmatpush1.msra.mxu0 0.0
        %545 = vmatprep.subr.mxu0 0.0
        %546 = vmatpush1.msra.mxu0 %v416
        %547 = vmatprep.subr.mxu0 0.0
        %548 = vmatpush2.msra.mxu0 0.0
        %549 = vmatprep.subr.mxu0 0.0
        %550 = vmatpush2.msra.mxu0 0.0
        %551 = vmatprep.subr.mxu0 0.0
        %552 = vmatpush2.msra.mxu0 0.0
        %553 = vmatprep.subr.mxu0 0.0
        %554 = vmatpush2.msra.mxu0 0.0
        %555 = vmatprep.subr.mxu0 0.0
        %556 = vmatpush2.msra.mxu0 0.0
        %557 = vmatprep.subr.mxu0 0.0
        %558 = vmatpush2.msra.mxu0 0.0
        %559 = vmatprep.subr.mxu0 0.0
        %560 = vmatpush2.msra.mxu0 0.0
        %561 = vmatprep.subr.mxu0 0.0
        %562 = vmatpush2.msra.mxu0 0.0
        %563 = vmatprep.subr.mxu0 0.0
        %564 = vmatpush2.msra.mxu0 0.0
        %565 = vmatprep.subr.mxu0 0.0
        %566 = vmatpush2.msra.mxu0 0.0
        %567 = vmatprep.subr.mxu0 0.0
        %568 = vmatpush2.msra.mxu0 0.0
        %569 = vmatprep.subr.mxu0 0.0
        %570 = vmatpush2.msra.mxu0 0.0
        %571 = vmatprep.subr.mxu0 0.0
        %572 = vmatpush2.msra.mxu0 0.0
        %573 = vmatprep.subr.mxu0 0.0
        %574 = vmatpush2.msra.mxu0 0.0
        %575 = vmatprep.subr.mxu0 0.0
        %576 = vmatpush2.msra.mxu0 0.0
        %577 = vmatprep.subr.mxu0 0.0
        %578 = vmatpush2.msra.mxu0 0.0
        %579 = vmatprep.mubr.f32.mxu0 0.0
        %580 = vmatmul.mubr.f32.gmra.mxu0 %v510
        %v581 = vpop.f32.mrf.mxu0
        %v582 = vadd.f32 %v507, %v581
        %v583 = vpop.f32.mrf.mxu0
        %584 = vmatprep.mubr.f32.mxu0 0.0
        %585 = vmatmul.mubr.f32.gmra.mxu0 %v513
        %v586 = vpop.f32.mrf.mxu0
        %v587 = vadd.f32 %v507, %v586
        %v588 = vpop.f32.mrf.mxu0
        %589 = vdwg.mxu0
        %v590 = vmax.f32 %v582, 0.0
        %v591 = vmax.f32 %v587, 0.0
        %vm592 = vcmask 261120
        %v594 = vsel %vm592, %v590, 0
        %v597 = vsel %vm592, %v591, 0
        %599 = vmatprep.subr.mxu0 0.0
        %600 = vmatpush1.msra.mxu0 0.0
        %601 = vmatprep.subr.mxu0 0.0
        %602 = vmatpush1.msra.mxu0 0.0
        %603 = vmatprep.subr.mxu0 0.0
        %604 = vmatpush1.msra.mxu0 0.0
        %605 = vmatprep.subr.mxu0 0.0
        %606 = vmatpush1.msra.mxu0 0.0
        %607 = vmatprep.subr.mxu0 0.0
        %608 = vmatpush1.msra.mxu0 0.0
        %609 = vmatprep.subr.mxu0 0.0
        %610 = vmatpush1.msra.mxu0 0.0
        %611 = vmatprep.subr.mxu0 0.0
        %612 = vmatpush1.msra.mxu0 0.0
        %613 = vmatprep.subr.mxu0 0.0
        %614 = vmatpush1.msra.mxu0 0.0
        %615 = vmatprep.subr.mxu0 0.0
        %616 = vmatpush1.msra.mxu0 0.0
        %617 = vmatprep.subr.mxu0 0.0
        %618 = vmatpush1.msra.mxu0 0.0
        %619 = vmatprep.subr.mxu0 0.0
        %620 = vmatpush1.msra.mxu0 0.0
        %621 = vmatprep.subr.mxu0 0.0
        %622 = vmatpush1.msra.mxu0 0.0
        %623 = vmatprep.subr.mxu0 0.0
        %624 = vmatpush1.msra.mxu0 %v421
        %625 = vmatprep.subr.mxu0 0.0
        %626 = vmatpush1.msra.mxu0 %v420
        %627 = vmatprep.subr.mxu0 0.0
        %628 = vmatpush1.msra.mxu0 %v419
        %629 = vmatprep.subr.mxu0 0.0
        %630 = vmatpush1.msra.mxu0 %v418
        %631 = vmatprep.subr.mxu0 0.0
        %632 = vmatpush2.msra.mxu0 0.0
        %633 = vmatprep.subr.mxu0 0.0
        %634 = vmatpush2.msra.mxu0 0.0
        %635 = vmatprep.subr.mxu0 0.0
        %636 = vmatpush2.msra.mxu0 0.0
        %637 = vmatprep.subr.mxu0 0.0
        %638 = vmatpush2.msra.mxu0 0.0
        %639 = vmatprep.subr.mxu0 0.0
        %640 = vmatpush2.msra.mxu0 0.0
        %641 = vmatprep.subr.mxu0 0.0
        %642 = vmatpush2.msra.mxu0 0.0
        %643 = vmatprep.subr.mxu0 0.0
        %644 = vmatpush2.msra.mxu0 0.0
        %645 = vmatprep.subr.mxu0 0.0
        %646 = vmatpush2.msra.mxu0 0.0
        %647 = vmatprep.subr.mxu0 0.0
        %648 = vmatpush2.msra.mxu0 0.0
        %649 = vmatprep.subr.mxu0 0.0
        %650 = vmatpush2.msra.mxu0 0.0
        %651 = vmatprep.subr.mxu0 0.0
        %652 = vmatpush2.msra.mxu0 0.0
        %653 = vmatprep.subr.mxu0 0.0
        %654 = vmatpush2.msra.mxu0 0.0
        %655 = vmatprep.subr.mxu0 0.0
        %656 = vmatpush2.msra.mxu0 0.0
        %657 = vmatprep.subr.mxu0 0.0
        %658 = vmatpush2.msra.mxu0 0.0
        %659 = vmatprep.subr.mxu0 0.0
        %660 = vmatpush2.msra.mxu0 0.0
        %661 = vmatprep.subr.mxu0 0.0
        %662 = vmatpush2.msra.mxu0 0.0
        %663 = vmatprep.mubr.f32.mxu0 0.0
        %664 = vmatmul.mubr.f32.gmra.mxu0 %v594
        %v665 = vpop.f32.mrf.mxu0
        %v666 = vadd.f32 0.0, %v665
        %v667 = vpop.f32.mrf.mxu0
        %668 = vmatprep.mubr.f32.mxu0 0.0
        %669 = vmatmul.mubr.f32.gmra.mxu0 %v597
        %v670 = vpop.f32.mrf.mxu0
        %v671 = vadd.f32 0.0, %v670
        %v672 = vpop.f32.mrf.mxu0
        %673 = vdwg.mxu0
        %v674 = vmax.f32 %v666, 0.0
        %v675 = vmax.f32 %v671, 0.0
        %s676 = scalar_lea.vmem [#allocation5], 32
        %v677 = vld [vmem:[%s676] sm:$0xff]
        %v678 = vld [vmem:[%s676 + $0x8] sm:$0xff]
        %v679 = vld [vmem:[%s676 + $0x10] sm:$0xff]
        %v680 = vld [vmem:[%s676 + $0x18] sm:$0xff]
        %v681 = vld [vmem:[#allocation7 + $0x1] sm:$0x1]
        %s682 = scalar_lea.vmem [#allocation5], 64
        %v683 = vld [vmem:[%s682] sm:$0xff]
        %v684 = vld [vmem:[%s682 + $0x8] sm:$0xff]
        %v685 = vld [vmem:[%s682 + $0x10] sm:$0xff]
        %v686 = vld [vmem:[%s682 + $0x18] sm:$0xff]
        %687 = vmatprep.subr.mxu0 0.0
        %688 = vmatpush1.msra.mxu0 0.0
        %689 = vmatprep.subr.mxu0 0.0
        %690 = vmatpush1.msra.mxu0 0.0
        %691 = vmatprep.subr.mxu0 0.0
        %692 = vmatpush1.msra.mxu0 0.0
        %693 = vmatprep.subr.mxu0 0.0
        %694 = vmatpush1.msra.mxu0 0.0
        %695 = vmatprep.subr.mxu0 0.0
        %696 = vmatpush1.msra.mxu0 0.0
        %697 = vmatprep.subr.mxu0 0.0
        %698 = vmatpush1.msra.mxu0 0.0
        %699 = vmatprep.subr.mxu0 0.0
        %700 = vmatpush1.msra.mxu0 0.0
        %701 = vmatprep.subr.mxu0 0.0
        %702 = vmatpush1.msra.mxu0 0.0
        %703 = vmatprep.subr.mxu0 0.0
        %704 = vmatpush1.msra.mxu0 0.0
        %705 = vmatprep.subr.mxu0 0.0
        %706 = vmatpush1.msra.mxu0 0.0
        %707 = vmatprep.subr.mxu0 0.0
        %708 = vmatpush1.msra.mxu0 0.0
        %709 = vmatprep.subr.mxu0 0.0
        %710 = vmatpush1.msra.mxu0 0.0
        %711 = vmatprep.subr.mxu0 0.0
        %712 = vmatpush1.msra.mxu0 0.0
        %713 = vmatprep.subr.mxu0 0.0
        %714 = vmatpush1.msra.mxu0 0.0
        %715 = vmatprep.subr.mxu0 0.0
        %716 = vmatpush1.msra.mxu0 %v675
        %717 = vmatprep.subr.mxu0 0.0
        %718 = vmatpush1.msra.mxu0 %v674
        %719 = vmatprep.subr.mxu0 0.0
        %720 = vmatpush2.msra.mxu0 0.0
        %721 = vmatprep.subr.mxu0 0.0
        %722 = vmatpush2.msra.mxu0 0.0
        %723 = vmatprep.subr.mxu0 0.0
        %724 = vmatpush2.msra.mxu0 0.0
        %725 = vmatprep.subr.mxu0 0.0
        %726 = vmatpush2.msra.mxu0 0.0
        %727 = vmatprep.subr.mxu0 0.0
        %728 = vmatpush2.msra.mxu0 0.0
        %729 = vmatprep.subr.mxu0 0.0
        %730 = vmatpush2.msra.mxu0 0.0
        %731 = vmatprep.subr.mxu0 0.0
        %732 = vmatpush2.msra.mxu0 0.0
        %733 = vmatprep.subr.mxu0 0.0
        %734 = vmatpush2.msra.mxu0 0.0
        %735 = vmatprep.subr.mxu0 0.0
        %736 = vmatpush2.msra.mxu0 0.0
        %737 = vmatprep.subr.mxu0 0.0
        %738 = vmatpush2.msra.mxu0 0.0
        %739 = vmatprep.subr.mxu0 0.0
        %740 = vmatpush2.msra.mxu0 0.0
        %741 = vmatprep.subr.mxu0 0.0
        %742 = vmatpush2.msra.mxu0 0.0
        %743 = vmatprep.subr.mxu0 0.0
        %744 = vmatpush2.msra.mxu0 0.0
        %745 = vmatprep.subr.mxu0 0.0
        %746 = vmatpush2.msra.mxu0 0.0
        %747 = vmatprep.subr.mxu0 0.0
        %748 = vmatpush2.msra.mxu0 0.0
        %749 = vmatprep.subr.mxu0 0.0
        %750 = vmatpush2.msra.mxu0 0.0
        %751 = vmatprep.mubr.f32.mxu0 0.0
        %752 = vmatmul.mubr.f32.gmra.mxu0 %v424
        %v753 = vpop.f32.mrf.mxu0
        %v754 = vadd.f32 0.0, %v753
        %v755 = vpop.f32.mrf.mxu0
        %756 = vmatprep.mubr.f32.mxu0 0.0
        %757 = vmatmul.mubr.f32.gmra.mxu0 %v427
        %v758 = vpop.f32.mrf.mxu0
        %v759 = vadd.f32 0.0, %v758
        %v760 = vpop.f32.mrf.mxu0
        %761 = vdwg.mxu0
        %v762 = vlaneseq
        %v763 = vshrl.u32 %v762, 7
        %v764 = vsub.s32 0, %v763
        %v765 = vrot.slane %v681, %v764
        %v767 = vsel %vm592, %v754, 0
        %v770 = vsel %vm592, %v759, 0
        %772 = vmatprep.subr.mxu0 0.0
        %773 = vmatpush1.msra.mxu0 0.0
        %774 = vmatprep.subr.mxu0 0.0
        %775 = vmatpush1.msra.mxu0 0.0
        %776 = vmatprep.subr.mxu0 0.0
        %777 = vmatpush1.msra.mxu0 0.0
        %778 = vmatprep.subr.mxu0 0.0
        %779 = vmatpush1.msra.mxu0 0.0
        %780 = vmatprep.subr.mxu0 0.0
        %781 = vmatpush1.msra.mxu0 0.0
        %782 = vmatprep.subr.mxu0 0.0
        %783 = vmatpush1.msra.mxu0 0.0
        %784 = vmatprep.subr.mxu0 0.0
        %785 = vmatpush1.msra.mxu0 0.0
        %786 = vmatprep.subr.mxu0 0.0
        %787 = vmatpush1.msra.mxu0 0.0
        %788 = vmatprep.subr.mxu0 0.0
        %789 = vmatpush1.msra.mxu0 0.0
        %790 = vmatprep.subr.mxu0 0.0
        %791 = vmatpush1.msra.mxu0 0.0
        %792 = vmatprep.subr.mxu0 0.0
        %793 = vmatpush1.msra.mxu0 0.0
        %794 = vmatprep.subr.mxu0 0.0
        %795 = vmatpush1.msra.mxu0 0.0
        %796 = vmatprep.subr.mxu0 0.0
        %797 = vmatpush1.msra.mxu0 %v680
        %798 = vmatprep.subr.mxu0 0.0
        %799 = vmatpush1.msra.mxu0 %v679
        %800 = vmatprep.subr.mxu0 0.0
        %801 = vmatpush1.msra.mxu0 %v678
        %802 = vmatprep.subr.mxu0 0.0
        %803 = vmatpush1.msra.mxu0 %v677
        %804 = vmatprep.subr.mxu0 0.0
        %805 = vmatpush2.msra.mxu0 0.0
        %806 = vmatprep.subr.mxu0 0.0
        %807 = vmatpush2.msra.mxu0 0.0
        %808 = vmatprep.subr.mxu0 0.0
        %809 = vmatpush2.msra.mxu0 0.0
        %810 = vmatprep.subr.mxu0 0.0
        %811 = vmatpush2.msra.mxu0 0.0
        %812 = vmatprep.subr.mxu0 0.0
        %813 = vmatpush2.msra.mxu0 0.0
        %814 = vmatprep.subr.mxu0 0.0
        %815 = vmatpush2.msra.mxu0 0.0
        %816 = vmatprep.subr.mxu0 0.0
        %817 = vmatpush2.msra.mxu0 0.0
        %818 = vmatprep.subr.mxu0 0.0
        %819 = vmatpush2.msra.mxu0 0.0
        %820 = vmatprep.subr.mxu0 0.0
        %821 = vmatpush2.msra.mxu0 0.0
        %822 = vmatprep.subr.mxu0 0.0
        %823 = vmatpush2.msra.mxu0 0.0
        %824 = vmatprep.subr.mxu0 0.0
        %825 = vmatpush2.msra.mxu0 0.0
        %826 = vmatprep.subr.mxu0 0.0
        %827 = vmatpush2.msra.mxu0 0.0
        %828 = vmatprep.subr.mxu0 0.0
        %829 = vmatpush2.msra.mxu0 0.0
        %830 = vmatprep.subr.mxu0 0.0
        %831 = vmatpush2.msra.mxu0 0.0
        %832 = vmatprep.subr.mxu0 0.0
        %833 = vmatpush2.msra.mxu0 0.0
        %834 = vmatprep.subr.mxu0 0.0
        %835 = vmatpush2.msra.mxu0 0.0
        %836 = vmatprep.mubr.f32.mxu0 0.0
        %837 = vmatmul.mubr.f32.gmra.mxu0 %v767
        %v838 = vpop.f32.mrf.mxu0
        %v839 = vadd.f32 %v765, %v838
        %v840 = vpop.f32.mrf.mxu0
        %841 = vmatprep.mubr.f32.mxu0 0.0
        %842 = vmatmul.mubr.f32.gmra.mxu0 %v770
        %v843 = vpop.f32.mrf.mxu0
        %v844 = vadd.f32 %v765, %v843
        %v845 = vpop.f32.mrf.mxu0
        %846 = vdwg.mxu0
        %v847 = vmax.f32 %v839, 0.0
        %v848 = vmax.f32 %v844, 0.0
        %v850 = vsel %vm592, %v847, 0
        %v853 = vsel %vm592, %v848, 0
        %855 = vmatprep.subr.mxu0 0.0
        %856 = vmatpush1.msra.mxu0 0.0
        %857 = vmatprep.subr.mxu0 0.0
        %858 = vmatpush1.msra.mxu0 0.0
        %859 = vmatprep.subr.mxu0 0.0
        %860 = vmatpush1.msra.mxu0 0.0
        %861 = vmatprep.subr.mxu0 0.0
        %862 = vmatpush1.msra.mxu0 0.0
        %863 = vmatprep.subr.mxu0 0.0
        %864 = vmatpush1.msra.mxu0 0.0
        %865 = vmatprep.subr.mxu0 0.0
        %866 = vmatpush1.msra.mxu0 0.0
        %867 = vmatprep.subr.mxu0 0.0
        %868 = vmatpush1.msra.mxu0 0.0
        %869 = vmatprep.subr.mxu0 0.0
        %870 = vmatpush1.msra.mxu0 0.0
        %871 = vmatprep.subr.mxu0 0.0
        %872 = vmatpush1.msra.mxu0 0.0
        %873 = vmatprep.subr.mxu0 0.0
        %874 = vmatpush1.msra.mxu0 0.0
        %875 = vmatprep.subr.mxu0 0.0
        %876 = vmatpush1.msra.mxu0 0.0
        %877 = vmatprep.subr.mxu0 0.0
        %878 = vmatpush1.msra.mxu0 0.0
        %879 = vmatprep.subr.mxu0 0.0
        %880 = vmatpush1.msra.mxu0 %v686
        %881 = vmatprep.subr.mxu0 0.0
        %882 = vmatpush1.msra.mxu0 %v685
        %883 = vmatprep.subr.mxu0 0.0
        %884 = vmatpush1.msra.mxu0 %v684
        %885 = vmatprep.subr.mxu0 0.0
        %886 = vmatpush1.msra.mxu0 %v683
        %887 = vmatprep.subr.mxu0 0.0
        %888 = vmatpush2.msra.mxu0 0.0
        %889 = vmatprep.subr.mxu0 0.0
        %890 = vmatpush2.msra.mxu0 0.0
        %891 = vmatprep.subr.mxu0 0.0
        %892 = vmatpush2.msra.mxu0 0.0
        %893 = vmatprep.subr.mxu0 0.0
        %894 = vmatpush2.msra.mxu0 0.0
        %895 = vmatprep.subr.mxu0 0.0
        %896 = vmatpush2.msra.mxu0 0.0
        %897 = vmatprep.subr.mxu0 0.0
        %898 = vmatpush2.msra.mxu0 0.0
        %899 = vmatprep.subr.mxu0 0.0
        %900 = vmatpush2.msra.mxu0 0.0
        %901 = vmatprep.subr.mxu0 0.0
        %902 = vmatpush2.msra.mxu0 0.0
        %903 = vmatprep.subr.mxu0 0.0
        %904 = vmatpush2.msra.mxu0 0.0
        %905 = vmatprep.subr.mxu0 0.0
        %906 = vmatpush2.msra.mxu0 0.0
        %907 = vmatprep.subr.mxu0 0.0
        %908 = vmatpush2.msra.mxu0 0.0
        %909 = vmatprep.subr.mxu0 0.0
        %910 = vmatpush2.msra.mxu0 0.0
        %911 = vmatprep.subr.mxu0 0.0
        %912 = vmatpush2.msra.mxu0 0.0
        %913 = vmatprep.subr.mxu0 0.0
        %914 = vmatpush2.msra.mxu0 0.0
        %915 = vmatprep.subr.mxu0 0.0
        %916 = vmatpush2.msra.mxu0 0.0
        %917 = vmatprep.subr.mxu0 0.0
        %918 = vmatpush2.msra.mxu0 0.0
        %919 = vmatprep.mubr.f32.mxu0 0.0
        %920 = vmatmul.mubr.f32.gmra.mxu0 %v850
        %v921 = vpop.f32.mrf.mxu0
        %v922 = vadd.f32 0.0, %v921
        %v923 = vpop.f32.mrf.mxu0
        %924 = vmatprep.mubr.f32.mxu0 0.0
        %925 = vmatmul.mubr.f32.gmra.mxu0 %v853
        %v926 = vpop.f32.mrf.mxu0
        %v927 = vadd.f32 0.0, %v926
        %v928 = vpop.f32.mrf.mxu0
        %929 = vdwg.mxu0
        %v930 = vmax.f32 %v922, 0.0
        %v931 = vmax.f32 %v927, 0.0
        %s932 = scalar_lea.vmem [#allocation5], 96
        %v933 = vld [vmem:[%s932] sm:$0xff]
        %v934 = vld [vmem:[%s932 + $0x8] sm:$0xff]
        %v935 = vld [vmem:[%s932 + $0x10] sm:$0xff]
        %v936 = vld [vmem:[%s932 + $0x18] sm:$0xff]
        %v937 = vld [vmem:[#allocation7 + $0x2] sm:$0x1]
        %s938 = scalar_lea.vmem [#allocation5], 128
        %v939 = vld [vmem:[%s938] sm:$0xff]
        %v940 = vld [vmem:[%s938 + $0x8] sm:$0xff]
        %v941 = vld [vmem:[%s938 + $0x10] sm:$0xff]
        %v942 = vld [vmem:[%s938 + $0x18] sm:$0xff]
        %943 = vmatprep.subr.mxu0 0.0
        %944 = vmatpush1.msra.mxu0 0.0
        %945 = vmatprep.subr.mxu0 0.0
        %946 = vmatpush1.msra.mxu0 0.0
        %947 = vmatprep.subr.mxu0 0.0
        %948 = vmatpush1.msra.mxu0 0.0
        %949 = vmatprep.subr.mxu0 0.0
        %950 = vmatpush1.msra.mxu0 0.0
        %951 = vmatprep.subr.mxu0 0.0
        %952 = vmatpush1.msra.mxu0 0.0
        %953 = vmatprep.subr.mxu0 0.0
        %954 = vmatpush1.msra.mxu0 0.0
        %955 = vmatprep.subr.mxu0 0.0
        %956 = vmatpush1.msra.mxu0 0.0
        %957 = vmatprep.subr.mxu0 0.0
        %958 = vmatpush1.msra.mxu0 0.0
        %959 = vmatprep.subr.mxu0 0.0
        %960 = vmatpush1.msra.mxu0 0.0
        %961 = vmatprep.subr.mxu0 0.0
        %962 = vmatpush1.msra.mxu0 0.0
        %963 = vmatprep.subr.mxu0 0.0
        %964 = vmatpush1.msra.mxu0 0.0
        %965 = vmatprep.subr.mxu0 0.0
        %966 = vmatpush1.msra.mxu0 0.0
        %967 = vmatprep.subr.mxu0 0.0
        %968 = vmatpush1.msra.mxu0 0.0
        %969 = vmatprep.subr.mxu0 0.0
        %970 = vmatpush1.msra.mxu0 0.0
        %971 = vmatprep.subr.mxu0 0.0
        %972 = vmatpush1.msra.mxu0 %v931
        %973 = vmatprep.subr.mxu0 0.0
        %974 = vmatpush1.msra.mxu0 %v930
        %975 = vmatprep.subr.mxu0 0.0
        %976 = vmatpush2.msra.mxu0 0.0
        %977 = vmatprep.subr.mxu0 0.0
        %978 = vmatpush2.msra.mxu0 0.0
        %979 = vmatprep.subr.mxu0 0.0
        %980 = vmatpush2.msra.mxu0 0.0
        %981 = vmatprep.subr.mxu0 0.0
        %982 = vmatpush2.msra.mxu0 0.0
        %983 = vmatprep.subr.mxu0 0.0
        %984 = vmatpush2.msra.mxu0 0.0
        %985 = vmatprep.subr.mxu0 0.0
        %986 = vmatpush2.msra.mxu0 0.0
        %987 = vmatprep.subr.mxu0 0.0
        %988 = vmatpush2.msra.mxu0 0.0
        %989 = vmatprep.subr.mxu0 0.0
        %990 = vmatpush2.msra.mxu0 0.0
        %991 = vmatprep.subr.mxu0 0.0
        %992 = vmatpush2.msra.mxu0 0.0
        %993 = vmatprep.subr.mxu0 0.0
        %994 = vmatpush2.msra.mxu0 0.0
        %995 = vmatprep.subr.mxu0 0.0
        %996 = vmatpush2.msra.mxu0 0.0
        %997 = vmatprep.subr.mxu0 0.0
        %998 = vmatpush2.msra.mxu0 0.0
        %999 = vmatprep.subr.mxu0 0.0
        %1000 = vmatpush2.msra.mxu0 0.0
        %1001 = vmatprep.subr.mxu0 0.0
        %1002 = vmatpush2.msra.mxu0 0.0
        %1003 = vmatprep.subr.mxu0 0.0
        %1004 = vmatpush2.msra.mxu0 0.0
        %1005 = vmatprep.subr.mxu0 0.0
        %1006 = vmatpush2.msra.mxu0 0.0
        %1007 = vmatprep.mubr.f32.mxu0 0.0
        %1008 = vmatmul.mubr.f32.gmra.mxu0 %v424
        %v1009 = vpop.f32.mrf.mxu0
        %v1010 = vadd.f32 0.0, %v1009
        %v1011 = vpop.f32.mrf.mxu0
        %1012 = vmatprep.mubr.f32.mxu0 0.0
        %1013 = vmatmul.mubr.f32.gmra.mxu0 %v427
        %v1014 = vpop.f32.mrf.mxu0
        %v1015 = vadd.f32 0.0, %v1014
        %v1016 = vpop.f32.mrf.mxu0
        %1017 = vdwg.mxu0
        %v1018 = vlaneseq
        %v1019 = vshrl.u32 %v1018, 7
        %v1020 = vsub.s32 0, %v1019
        %v1021 = vrot.slane %v937, %v1020
        %v1023 = vsel %vm592, %v1010, 0
        %v1026 = vsel %vm592, %v1015, 0
        %1028 = vmatprep.subr.mxu0 0.0
        %1029 = vmatpush1.msra.mxu0 0.0
        %1030 = vmatprep.subr.mxu0 0.0
        %1031 = vmatpush1.msra.mxu0 0.0
        %1032 = vmatprep.subr.mxu0 0.0
        %1033 = vmatpush1.msra.mxu0 0.0
        %1034 = vmatprep.subr.mxu0 0.0
        %1035 = vmatpush1.msra.mxu0 0.0
        %1036 = vmatprep.subr.mxu0 0.0
        %1037 = vmatpush1.msra.mxu0 0.0
        %1038 = vmatprep.subr.mxu0 0.0
        %1039 = vmatpush1.msra.mxu0 0.0
        %1040 = vmatprep.subr.mxu0 0.0
        %1041 = vmatpush1.msra.mxu0 0.0
        %1042 = vmatprep.subr.mxu0 0.0
        %1043 = vmatpush1.msra.mxu0 0.0
        %1044 = vmatprep.subr.mxu0 0.0
        %1045 = vmatpush1.msra.mxu0 0.0
        %1046 = vmatprep.subr.mxu0 0.0
        %1047 = vmatpush1.msra.mxu0 0.0
        %1048 = vmatprep.subr.mxu0 0.0
        %1049 = vmatpush1.msra.mxu0 0.0
        %1050 = vmatprep.subr.mxu0 0.0
        %1051 = vmatpush1.msra.mxu0 0.0
        %1052 = vmatprep.subr.mxu0 0.0
        %1053 = vmatpush1.msra.mxu0 %v936
        %1054 = vmatprep.subr.mxu0 0.0
        %1055 = vmatpush1.msra.mxu0 %v935
        %1056 = vmatprep.subr.mxu0 0.0
        %1057 = vmatpush1.msra.mxu0 %v934
        %1058 = vmatprep.subr.mxu0 0.0
        %1059 = vmatpush1.msra.mxu0 %v933
        %1060 = vmatprep.subr.mxu0 0.0
        %1061 = vmatpush2.msra.mxu0 0.0
        %1062 = vmatprep.subr.mxu0 0.0
        %1063 = vmatpush2.msra.mxu0 0.0
        %1064 = vmatprep.subr.mxu0 0.0
        %1065 = vmatpush2.msra.mxu0 0.0
        %1066 = vmatprep.subr.mxu0 0.0
        %1067 = vmatpush2.msra.mxu0 0.0
        %1068 = vmatprep.subr.mxu0 0.0
        %1069 = vmatpush2.msra.mxu0 0.0
        %1070 = vmatprep.subr.mxu0 0.0
        %1071 = vmatpush2.msra.mxu0 0.0
        %1072 = vmatprep.subr.mxu0 0.0
        %1073 = vmatpush2.msra.mxu0 0.0
        %1074 = vmatprep.subr.mxu0 0.0
        %1075 = vmatpush2.msra.mxu0 0.0
        %1076 = vmatprep.subr.mxu0 0.0
        %1077 = vmatpush2.msra.mxu0 0.0
        %1078 = vmatprep.subr.mxu0 0.0
        %1079 = vmatpush2.msra.mxu0 0.0
        %1080 = vmatprep.subr.mxu0 0.0
        %1081 = vmatpush2.msra.mxu0 0.0
        %1082 = vmatprep.subr.mxu0 0.0
        %1083 = vmatpush2.msra.mxu0 0.0
        %1084 = vmatprep.subr.mxu0 0.0
        %1085 = vmatpush2.msra.mxu0 0.0
        %1086 = vmatprep.subr.mxu0 0.0
        %1087 = vmatpush2.msra.mxu0 0.0
        %1088 = vmatprep.subr.mxu0 0.0
        %1089 = vmatpush2.msra.mxu0 0.0
        %1090 = vmatprep.subr.mxu0 0.0
        %1091 = vmatpush2.msra.mxu0 0.0
        %1092 = vmatprep.mubr.f32.mxu0 0.0
        %1093 = vmatmul.mubr.f32.gmra.mxu0 %v1023
        %v1094 = vpop.f32.mrf.mxu0
        %v1095 = vadd.f32 %v1021, %v1094
        %v1096 = vpop.f32.mrf.mxu0
        %1097 = vmatprep.mubr.f32.mxu0 0.0
        %1098 = vmatmul.mubr.f32.gmra.mxu0 %v1026
        %v1099 = vpop.f32.mrf.mxu0
        %v1100 = vadd.f32 %v1021, %v1099
        %v1101 = vpop.f32.mrf.mxu0
        %1102 = vdwg.mxu0
        %v1103 = vmax.f32 %v1095, 0.0
        %v1104 = vmax.f32 %v1100, 0.0
        %v1106 = vsel %vm592, %v1103, 0
        %v1109 = vsel %vm592, %v1104, 0
        %1111 = vmatprep.subr.mxu0 0.0
        %1112 = vmatpush1.msra.mxu0 0.0
        %1113 = vmatprep.subr.mxu0 0.0
        %1114 = vmatpush1.msra.mxu0 0.0
        %1115 = vmatprep.subr.mxu0 0.0
        %1116 = vmatpush1.msra.mxu0 0.0
        %1117 = vmatprep.subr.mxu0 0.0
        %1118 = vmatpush1.msra.mxu0 0.0
        %1119 = vmatprep.subr.mxu0 0.0
        %1120 = vmatpush1.msra.mxu0 0.0
        %1121 = vmatprep.subr.mxu0 0.0
        %1122 = vmatpush1.msra.mxu0 0.0
        %1123 = vmatprep.subr.mxu0 0.0
        %1124 = vmatpush1.msra.mxu0 0.0
        %1125 = vmatprep.subr.mxu0 0.0
        %1126 = vmatpush1.msra.mxu0 0.0
        %1127 = vmatprep.subr.mxu0 0.0
        %1128 = vmatpush1.msra.mxu0 0.0
        %1129 = vmatprep.subr.mxu0 0.0
        %1130 = vmatpush1.msra.mxu0 0.0
        %1131 = vmatprep.subr.mxu0 0.0
        %1132 = vmatpush1.msra.mxu0 0.0
        %1133 = vmatprep.subr.mxu0 0.0
        %1134 = vmatpush1.msra.mxu0 0.0
        %1135 = vmatprep.subr.mxu0 0.0
        %1136 = vmatpush1.msra.mxu0 %v942
        %1137 = vmatprep.subr.mxu0 0.0
        %1138 = vmatpush1.msra.mxu0 %v941
        %1139 = vmatprep.subr.mxu0 0.0
        %1140 = vmatpush1.msra.mxu0 %v940
        %1141 = vmatprep.subr.mxu0 0.0
        %1142 = vmatpush1.msra.mxu0 %v939
        %1143 = vmatprep.subr.mxu0 0.0
        %1144 = vmatpush2.msra.mxu0 0.0
        %1145 = vmatprep.subr.mxu0 0.0
        %1146 = vmatpush2.msra.mxu0 0.0
        %1147 = vmatprep.subr.mxu0 0.0
        %1148 = vmatpush2.msra.mxu0 0.0
        %1149 = vmatprep.subr.mxu0 0.0
        %1150 = vmatpush2.msra.mxu0 0.0
        %1151 = vmatprep.subr.mxu0 0.0
        %1152 = vmatpush2.msra.mxu0 0.0
        %1153 = vmatprep.subr.mxu0 0.0
        %1154 = vmatpush2.msra.mxu0 0.0
        %1155 = vmatprep.subr.mxu0 0.0
        %1156 = vmatpush2.msra.mxu0 0.0
        %1157 = vmatprep.subr.mxu0 0.0
        %1158 = vmatpush2.msra.mxu0 0.0
        %1159 = vmatprep.subr.mxu0 0.0
        %1160 = vmatpush2.msra.mxu0 0.0
        %1161 = vmatprep.subr.mxu0 0.0
        %1162 = vmatpush2.msra.mxu0 0.0
        %1163 = vmatprep.subr.mxu0 0.0
        %1164 = vmatpush2.msra.mxu0 0.0
        %1165 = vmatprep.subr.mxu0 0.0
        %1166 = vmatpush2.msra.mxu0 0.0
        %1167 = vmatprep.subr.mxu0 0.0
        %1168 = vmatpush2.msra.mxu0 0.0
        %1169 = vmatprep.subr.mxu0 0.0
        %1170 = vmatpush2.msra.mxu0 0.0
        %1171 = vmatprep.subr.mxu0 0.0
        %1172 = vmatpush2.msra.mxu0 0.0
        %1173 = vmatprep.subr.mxu0 0.0
        %1174 = vmatpush2.msra.mxu0 0.0
        %1175 = vmatprep.mubr.f32.mxu0 0.0
        %1176 = vmatmul.mubr.f32.gmra.mxu0 %v1106
        %v1177 = vpop.f32.mrf.mxu0
        %v1178 = vadd.f32 0.0, %v1177
        %v1179 = vpop.f32.mrf.mxu0
        %1180 = vmatprep.mubr.f32.mxu0 0.0
        %1181 = vmatmul.mubr.f32.gmra.mxu0 %v1109
        %v1182 = vpop.f32.mrf.mxu0
        %v1183 = vadd.f32 0.0, %v1182
        %v1184 = vpop.f32.mrf.mxu0
        %1185 = vdwg.mxu0
        %v1186 = vmax.f32 %v1178, 0.0
        %v1187 = vmax.f32 %v1183, 0.0
        %v1189 = vsel %vm422, 1.0, 0
        %1191 = vmatprep.subr.mxu0 0.0
        %1192 = vmatpush1.msra.mxu0 0.0
        %1193 = vmatprep.subr.mxu0 0.0
        %1194 = vmatpush1.msra.mxu0 0.0
        %1195 = vmatprep.subr.mxu0 0.0
        %1196 = vmatpush1.msra.mxu0 0.0
        %1197 = vmatprep.subr.mxu0 0.0
        %1198 = vmatpush1.msra.mxu0 0.0
        %1199 = vmatprep.subr.mxu0 0.0
        %1200 = vmatpush1.msra.mxu0 0.0
        %1201 = vmatprep.subr.mxu0 0.0
        %1202 = vmatpush1.msra.mxu0 0.0
        %1203 = vmatprep.subr.mxu0 0.0
        %1204 = vmatpush1.msra.mxu0 0.0
        %1205 = vmatprep.subr.mxu0 0.0
        %1206 = vmatpush1.msra.mxu0 0.0
        %1207 = vmatprep.subr.mxu0 0.0
        %1208 = vmatpush1.msra.mxu0 0.0
        %1209 = vmatprep.subr.mxu0 0.0
        %1210 = vmatpush1.msra.mxu0 0.0
        %1211 = vmatprep.subr.mxu0 0.0
        %1212 = vmatpush1.msra.mxu0 0.0
        %1213 = vmatprep.subr.mxu0 0.0
        %1214 = vmatpush1.msra.mxu0 0.0
        %1215 = vmatprep.subr.mxu0 0.0
        %1216 = vmatpush1.msra.mxu0 0.0
        %1217 = vmatprep.subr.mxu0 0.0
        %1218 = vmatpush1.msra.mxu0 0.0
        %1219 = vmatprep.subr.mxu0 0.0
        %1220 = vmatpush1.msra.mxu0 %v675
        %1221 = vmatprep.subr.mxu0 0.0
        %1222 = vmatpush1.msra.mxu0 %v674
        %1223 = vmatprep.subr.mxu0 0.0
        %1224 = vmatpush2.msra.mxu0 0.0
        %1225 = vmatprep.subr.mxu0 0.0
        %1226 = vmatpush2.msra.mxu0 0.0
        %1227 = vmatprep.subr.mxu0 0.0
        %1228 = vmatpush2.msra.mxu0 0.0
        %1229 = vmatprep.subr.mxu0 0.0
        %1230 = vmatpush2.msra.mxu0 0.0
        %1231 = vmatprep.subr.mxu0 0.0
        %1232 = vmatpush2.msra.mxu0 0.0
        %1233 = vmatprep.subr.mxu0 0.0
        %1234 = vmatpush2.msra.mxu0 0.0
        %1235 = vmatprep.subr.mxu0 0.0
        %1236 = vmatpush2.msra.mxu0 0.0
        %1237 = vmatprep.subr.mxu0 0.0
        %1238 = vmatpush2.msra.mxu0 0.0
        %1239 = vmatprep.subr.mxu0 0.0
        %1240 = vmatpush2.msra.mxu0 0.0
        %1241 = vmatprep.subr.mxu0 0.0
        %1242 = vmatpush2.msra.mxu0 0.0
        %1243 = vmatprep.subr.mxu0 0.0
        %1244 = vmatpush2.msra.mxu0 0.0
        %1245 = vmatprep.subr.mxu0 0.0
        %1246 = vmatpush2.msra.mxu0 0.0
        %1247 = vmatprep.subr.mxu0 0.0
        %1248 = vmatpush2.msra.mxu0 0.0
        %1249 = vmatprep.subr.mxu0 0.0
        %1250 = vmatpush2.msra.mxu0 0.0
        %1251 = vmatprep.subr.mxu0 0.0
        %1252 = vmatpush2.msra.mxu0 0.0
        %1253 = vmatprep.subr.mxu0 0.0
        %1254 = vmatpush2.msra.mxu0 0.0
        %1255 = vmatprep.mubr.f32.mxu0 0.0
        %1256 = vmatmul.mubr.f32.gmra.mxu0 %v1189
        %v1257 = vpop.f32.mrf.mxu0
        %v1258 = vadd.f32 0.0, %v1257
        %v1259 = vpop.f32.mrf.mxu0
        %1260 = vdwg.mxu0
        %1261 = vmatprep.subr.mxu0 0.0
        %1262 = vmatpush1.msra.mxu0 0.0
        %1263 = vmatprep.subr.mxu0 0.0
        %1264 = vmatpush1.msra.mxu0 0.0
        %1265 = vmatprep.subr.mxu0 0.0
        %1266 = vmatpush1.msra.mxu0 0.0
        %1267 = vmatprep.subr.mxu0 0.0
        %1268 = vmatpush1.msra.mxu0 0.0
        %1269 = vmatprep.subr.mxu0 0.0
        %1270 = vmatpush1.msra.mxu0 0.0
        %1271 = vmatprep.subr.mxu0 0.0
        %1272 = vmatpush1.msra.mxu0 0.0
        %1273 = vmatprep.subr.mxu0 0.0
        %1274 = vmatpush1.msra.mxu0 0.0
        %1275 = vmatprep.subr.mxu0 0.0
        %1276 = vmatpush1.msra.mxu0 0.0
        %1277 = vmatprep.subr.mxu0 0.0
        %1278 = vmatpush1.msra.mxu0 0.0
        %1279 = vmatprep.subr.mxu0 0.0
        %1280 = vmatpush1.msra.mxu0 0.0
        %1281 = vmatprep.subr.mxu0 0.0
        %1282 = vmatpush1.msra.mxu0 0.0
        %1283 = vmatprep.subr.mxu0 0.0
        %1284 = vmatpush1.msra.mxu0 0.0
        %1285 = vmatprep.subr.mxu0 0.0
        %1286 = vmatpush1.msra.mxu0 0.0
        %1287 = vmatprep.subr.mxu0 0.0
        %1288 = vmatpush1.msra.mxu0 0.0
        %1289 = vmatprep.subr.mxu0 0.0
        %1290 = vmatpush1.msra.mxu0 %v931
        %1291 = vmatprep.subr.mxu0 0.0
        %1292 = vmatpush1.msra.mxu0 %v930
        %1293 = vmatprep.subr.mxu0 0.0
        %1294 = vmatpush2.msra.mxu0 0.0
        %1295 = vmatprep.subr.mxu0 0.0
        %1296 = vmatpush2.msra.mxu0 0.0
        %1297 = vmatprep.subr.mxu0 0.0
        %1298 = vmatpush2.msra.mxu0 0.0
        %1299 = vmatprep.subr.mxu0 0.0
        %1300 = vmatpush2.msra.mxu0 0.0
        %1301 = vmatprep.subr.mxu0 0.0
        %1302 = vmatpush2.msra.mxu0 0.0
        %1303 = vmatprep.subr.mxu0 0.0
        %1304 = vmatpush2.msra.mxu0 0.0
        %1305 = vmatprep.subr.mxu0 0.0
        %1306 = vmatpush2.msra.mxu0 0.0
        %1307 = vmatprep.subr.mxu0 0.0
        %1308 = vmatpush2.msra.mxu0 0.0
        %1309 = vmatprep.subr.mxu0 0.0
        %1310 = vmatpush2.msra.mxu0 0.0
        %1311 = vmatprep.subr.mxu0 0.0
        %1312 = vmatpush2.msra.mxu0 0.0
        %1313 = vmatprep.subr.mxu0 0.0
        %1314 = vmatpush2.msra.mxu0 0.0
        %1315 = vmatprep.subr.mxu0 0.0
        %1316 = vmatpush2.msra.mxu0 0.0
        %1317 = vmatprep.subr.mxu0 0.0
        %1318 = vmatpush2.msra.mxu0 0.0
        %1319 = vmatprep.subr.mxu0 0.0
        %1320 = vmatpush2.msra.mxu0 0.0
        %1321 = vmatprep.subr.mxu0 0.0
        %1322 = vmatpush2.msra.mxu0 0.0
        %1323 = vmatprep.subr.mxu0 0.0
        %1324 = vmatpush2.msra.mxu0 0.0
        %1325 = vmatprep.mubr.f32.mxu0 0.0
        %1326 = vmatmul.mubr.f32.gmra.mxu0 %v1189
        %v1327 = vpop.f32.mrf.mxu0
        %v1328 = vadd.f32 0.0, %v1327
        %v1329 = vpop.f32.mrf.mxu0
        %1330 = vdwg.mxu0
        %1331 = vmatprep.subr.mxu0 0.0
        %1332 = vmatpush1.msra.mxu0 0.0
        %1333 = vmatprep.subr.mxu0 0.0
        %1334 = vmatpush1.msra.mxu0 0.0
        %1335 = vmatprep.subr.mxu0 0.0
        %1336 = vmatpush1.msra.mxu0 0.0
        %1337 = vmatprep.subr.mxu0 0.0
        %1338 = vmatpush1.msra.mxu0 0.0
        %1339 = vmatprep.subr.mxu0 0.0
        %1340 = vmatpush1.msra.mxu0 0.0
        %1341 = vmatprep.subr.mxu0 0.0
        %1342 = vmatpush1.msra.mxu0 0.0
        %1343 = vmatprep.subr.mxu0 0.0
        %1344 = vmatpush1.msra.mxu0 0.0
        %1345 = vmatprep.subr.mxu0 0.0
        %1346 = vmatpush1.msra.mxu0 0.0
        %1347 = vmatprep.subr.mxu0 0.0
        %1348 = vmatpush1.msra.mxu0 0.0
        %1349 = vmatprep.subr.mxu0 0.0
        %1350 = vmatpush1.msra.mxu0 0.0
        %1351 = vmatprep.subr.mxu0 0.0
        %1352 = vmatpush1.msra.mxu0 0.0
        %1353 = vmatprep.subr.mxu0 0.0
        %1354 = vmatpush1.msra.mxu0 0.0
        %1355 = vmatprep.subr.mxu0 0.0
        %1356 = vmatpush1.msra.mxu0 0.0
        %1357 = vmatprep.subr.mxu0 0.0
        %1358 = vmatpush1.msra.mxu0 0.0
        %1359 = vmatprep.subr.mxu0 0.0
        %1360 = vmatpush1.msra.mxu0 %v1187
        %1361 = vmatprep.subr.mxu0 0.0
        %1362 = vmatpush1.msra.mxu0 %v1186
        %1363 = vmatprep.subr.mxu0 0.0
        %1364 = vmatpush2.msra.mxu0 0.0
        %1365 = vmatprep.subr.mxu0 0.0
        %1366 = vmatpush2.msra.mxu0 0.0
        %1367 = vmatprep.subr.mxu0 0.0
        %1368 = vmatpush2.msra.mxu0 0.0
        %1369 = vmatprep.subr.mxu0 0.0
        %1370 = vmatpush2.msra.mxu0 0.0
        %1371 = vmatprep.subr.mxu0 0.0
        %1372 = vmatpush2.msra.mxu0 0.0
        %1373 = vmatprep.subr.mxu0 0.0
        %1374 = vmatpush2.msra.mxu0 0.0
        %1375 = vmatprep.subr.mxu0 0.0
        %1376 = vmatpush2.msra.mxu0 0.0
        %1377 = vmatprep.subr.mxu0 0.0
        %1378 = vmatpush2.msra.mxu0 0.0
        %1379 = vmatprep.subr.mxu0 0.0
        %1380 = vmatpush2.msra.mxu0 0.0
        %1381 = vmatprep.subr.mxu0 0.0
        %1382 = vmatpush2.msra.mxu0 0.0
        %1383 = vmatprep.subr.mxu0 0.0
        %1384 = vmatpush2.msra.mxu0 0.0
        %1385 = vmatprep.subr.mxu0 0.0
        %1386 = vmatpush2.msra.mxu0 0.0
        %1387 = vmatprep.subr.mxu0 0.0
        %1388 = vmatpush2.msra.mxu0 0.0
        %1389 = vmatprep.subr.mxu0 0.0
        %1390 = vmatpush2.msra.mxu0 0.0
        %1391 = vmatprep.subr.mxu0 0.0
        %1392 = vmatpush2.msra.mxu0 0.0
        %1393 = vmatprep.subr.mxu0 0.0
        %1394 = vmatpush2.msra.mxu0 0.0
        %1395 = vmatprep.mubr.f32.mxu0 0.0
        %1396 = vmatmul.mubr.f32.gmra.mxu0 %v1189
        %v1397 = vpop.f32.mrf.mxu0
        %v1398 = vadd.f32 0.0, %v1397
        %v1399 = vpop.f32.mrf.mxu0
        %1400 = vdwg.mxu0
        %v1401 = vld [vmem:[%s5] sm:$0xff]
        %v1402 = vld [vmem:[%s5 + $0x8] sm:$0xff]
        %v1403 = vld [vmem:[%s5 + $0x10] sm:$0xff]
        %v1404 = vld [vmem:[%s5 + $0x18] sm:$0xff]
        %s1405 = scalar_lea.vmem %s5, 32
        %v1406 = vld [vmem:[%s1405] sm:$0xff]
        %v1407 = vld [vmem:[%s1405 + $0x8] sm:$0xff]
        %v1408 = vld [vmem:[%s1405 + $0x10] sm:$0xff]
        %v1409 = vld [vmem:[%s1405 + $0x18] sm:$0xff]
        %v1411 = vsel %vm592, %v1328, 0
        %1413 = vmatprep.subr.mxu0 0.0
        %1414 = vmatpush1.msra.mxu0 0.0
        %1415 = vmatprep.subr.mxu0 0.0
        %1416 = vmatpush1.msra.mxu0 0.0
        %1417 = vmatprep.subr.mxu0 0.0
        %1418 = vmatpush1.msra.mxu0 0.0
        %1419 = vmatprep.subr.mxu0 0.0
        %1420 = vmatpush1.msra.mxu0 0.0
        %1421 = vmatprep.subr.mxu0 0.0
        %1422 = vmatpush1.msra.mxu0 0.0
        %1423 = vmatprep.subr.mxu0 0.0
        %1424 = vmatpush1.msra.mxu0 0.0
        %1425 = vmatprep.subr.mxu0 0.0
        %1426 = vmatpush1.msra.mxu0 0.0
        %1427 = vmatprep.subr.mxu0 0.0
        %1428 = vmatpush1.msra.mxu0 0.0
        %1429 = vmatprep.subr.mxu0 0.0
        %1430 = vmatpush1.msra.mxu0 0.0
        %1431 = vmatprep.subr.mxu0 0.0
        %1432 = vmatpush1.msra.mxu0 0.0
        %1433 = vmatprep.subr.mxu0 0.0
        %1434 = vmatpush1.msra.mxu0 0.0
        %1435 = vmatprep.subr.mxu0 0.0
        %1436 = vmatpush1.msra.mxu0 0.0
        %1437 = vmatprep.subr.mxu0 0.0
        %1438 = vmatpush1.msra.mxu0 %v1409
        %1439 = vmatprep.subr.mxu0 0.0
        %1440 = vmatpush1.msra.mxu0 %v1408
        %1441 = vmatprep.subr.mxu0 0.0
        %1442 = vmatpush1.msra.mxu0 %v1407
        %1443 = vmatprep.subr.mxu0 0.0
        %1444 = vmatpush1.msra.mxu0 %v1406
        %1445 = vmatprep.subr.mxu0 0.0
        %1446 = vmatpush2.msra.mxu0 0.0
        %1447 = vmatprep.subr.mxu0 0.0
        %1448 = vmatpush2.msra.mxu0 0.0
        %1449 = vmatprep.subr.mxu0 0.0
        %1450 = vmatpush2.msra.mxu0 0.0
        %1451 = vmatprep.subr.mxu0 0.0
        %1452 = vmatpush2.msra.mxu0 0.0
        %1453 = vmatprep.subr.mxu0 0.0
        %1454 = vmatpush2.msra.mxu0 0.0
        %1455 = vmatprep.subr.mxu0 0.0
        %1456 = vmatpush2.msra.mxu0 0.0
        %1457 = vmatprep.subr.mxu0 0.0
        %1458 = vmatpush2.msra.mxu0 0.0
        %1459 = vmatprep.subr.mxu0 0.0
        %1460 = vmatpush2.msra.mxu0 0.0
        %1461 = vmatprep.subr.mxu0 0.0
        %1462 = vmatpush2.msra.mxu0 0.0
        %1463 = vmatprep.subr.mxu0 0.0
        %1464 = vmatpush2.msra.mxu0 0.0
        %1465 = vmatprep.subr.mxu0 0.0
        %1466 = vmatpush2.msra.mxu0 0.0
        %1467 = vmatprep.subr.mxu0 0.0
        %1468 = vmatpush2.msra.mxu0 0.0
        %1469 = vmatprep.subr.mxu0 0.0
        %1470 = vmatpush2.msra.mxu0 0.0
        %1471 = vmatprep.subr.mxu0 0.0
        %1472 = vmatpush2.msra.mxu0 0.0
        %1473 = vmatprep.subr.mxu0 0.0
        %1474 = vmatpush2.msra.mxu0 0.0
        %1475 = vmatprep.subr.mxu0 0.0
        %1476 = vmatpush2.msra.mxu0 0.0
        %1477 = vmatprep.mubr.f32.mxu0 0.0
        %1478 = vmatmul.mubr.f32.gmra.mxu0 %v1411
        %v1479 = vpop.f32.mrf.mxu0
        %v1480 = vadd.f32 0.0, %v1479
        %v1481 = vpop.f32.mrf.mxu0
        %1482 = vdwg.mxu0
        %v1484 = vsel %vm592, %v1258, 0
        %1486 = vmatprep.subr.mxu0 0.0
        %1487 = vmatpush1.msra.mxu0 0.0
        %1488 = vmatprep.subr.mxu0 0.0
        %1489 = vmatpush1.msra.mxu0 0.0
        %1490 = vmatprep.subr.mxu0 0.0
        %1491 = vmatpush1.msra.mxu0 0.0
        %1492 = vmatprep.subr.mxu0 0.0
        %1493 = vmatpush1.msra.mxu0 0.0
        %1494 = vmatprep.subr.mxu0 0.0
        %1495 = vmatpush1.msra.mxu0 0.0
        %1496 = vmatprep.subr.mxu0 0.0
        %1497 = vmatpush1.msra.mxu0 0.0
        %1498 = vmatprep.subr.mxu0 0.0
        %1499 = vmatpush1.msra.mxu0 0.0
        %1500 = vmatprep.subr.mxu0 0.0
        %1501 = vmatpush1.msra.mxu0 0.0
        %1502 = vmatprep.subr.mxu0 0.0
        %1503 = vmatpush1.msra.mxu0 0.0
        %1504 = vmatprep.subr.mxu0 0.0
        %1505 = vmatpush1.msra.mxu0 0.0
        %1506 = vmatprep.subr.mxu0 0.0
        %1507 = vmatpush1.msra.mxu0 0.0
        %1508 = vmatprep.subr.mxu0 0.0
        %1509 = vmatpush1.msra.mxu0 0.0
        %1510 = vmatprep.subr.mxu0 0.0
        %1511 = vmatpush1.msra.mxu0 %v1404
        %1512 = vmatprep.subr.mxu0 0.0
        %1513 = vmatpush1.msra.mxu0 %v1403
        %1514 = vmatprep.subr.mxu0 0.0
        %1515 = vmatpush1.msra.mxu0 %v1402
        %1516 = vmatprep.subr.mxu0 0.0
        %1517 = vmatpush1.msra.mxu0 %v1401
        %1518 = vmatprep.subr.mxu0 0.0
        %1519 = vmatpush2.msra.mxu0 0.0
        %1520 = vmatprep.subr.mxu0 0.0
        %1521 = vmatpush2.msra.mxu0 0.0
        %1522 = vmatprep.subr.mxu0 0.0
        %1523 = vmatpush2.msra.mxu0 0.0
        %1524 = vmatprep.subr.mxu0 0.0
        %1525 = vmatpush2.msra.mxu0 0.0
        %1526 = vmatprep.subr.mxu0 0.0
        %1527 = vmatpush2.msra.mxu0 0.0
        %1528 = vmatprep.subr.mxu0 0.0
        %1529 = vmatpush2.msra.mxu0 0.0
        %1530 = vmatprep.subr.mxu0 0.0
        %1531 = vmatpush2.msra.mxu0 0.0
        %1532 = vmatprep.subr.mxu0 0.0
        %1533 = vmatpush2.msra.mxu0 0.0
        %1534 = vmatprep.subr.mxu0 0.0
        %1535 = vmatpush2.msra.mxu0 0.0
        %1536 = vmatprep.subr.mxu0 0.0
        %1537 = vmatpush2.msra.mxu0 0.0
        %1538 = vmatprep.subr.mxu0 0.0
        %1539 = vmatpush2.msra.mxu0 0.0
        %1540 = vmatprep.subr.mxu0 0.0
        %1541 = vmatpush2.msra.mxu0 0.0
        %1542 = vmatprep.subr.mxu0 0.0
        %1543 = vmatpush2.msra.mxu0 0.0
        %1544 = vmatprep.subr.mxu0 0.0
        %1545 = vmatpush2.msra.mxu0 0.0
        %1546 = vmatprep.subr.mxu0 0.0
        %1547 = vmatpush2.msra.mxu0 0.0
        %1548 = vmatprep.subr.mxu0 0.0
        %1549 = vmatpush2.msra.mxu0 0.0
        %1550 = vmatprep.mubr.f32.mxu0 0.0
        %1551 = vmatmul.mubr.f32.gmra.mxu0 %v1484
        %v1552 = vpop.f32.mrf.mxu0
        %v1553 = vadd.f32 %v1480, %v1552
        %v1554 = vpop.f32.mrf.mxu0
        %1555 = vdwg.mxu0
        %s1556 = scalar_lea.vmem %s5, 64
        %v1557 = vld [vmem:[%s1556] sm:$0xff]
        %v1558 = vld [vmem:[%s1556 + $0x8] sm:$0xff]
        %v1559 = vld [vmem:[%s1556 + $0x10] sm:$0xff]
        %v1560 = vld [vmem:[%s1556 + $0x18] sm:$0xff]
        %v1562 = vsel %vm592, %v1398, 0
        %1564 = vmatprep.subr.mxu0 0.0
        %1565 = vmatpush1.msra.mxu0 0.0
        %1566 = vmatprep.subr.mxu0 0.0
        %1567 = vmatpush1.msra.mxu0 0.0
        %1568 = vmatprep.subr.mxu0 0.0
        %1569 = vmatpush1.msra.mxu0 0.0
        %1570 = vmatprep.subr.mxu0 0.0
        %1571 = vmatpush1.msra.mxu0 0.0
        %1572 = vmatprep.subr.mxu0 0.0
        %1573 = vmatpush1.msra.mxu0 0.0
        %1574 = vmatprep.subr.mxu0 0.0
        %1575 = vmatpush1.msra.mxu0 0.0
        %1576 = vmatprep.subr.mxu0 0.0
        %1577 = vmatpush1.msra.mxu0 0.0
        %1578 = vmatprep.subr.mxu0 0.0
        %1579 = vmatpush1.msra.mxu0 0.0
        %1580 = vmatprep.subr.mxu0 0.0
        %1581 = vmatpush1.msra.mxu0 0.0
        %1582 = vmatprep.subr.mxu0 0.0
        %1583 = vmatpush1.msra.mxu0 0.0
        %1584 = vmatprep.subr.mxu0 0.0
        %1585 = vmatpush1.msra.mxu0 0.0
        %1586 = vmatprep.subr.mxu0 0.0
        %1587 = vmatpush1.msra.mxu0 0.0
        %1588 = vmatprep.subr.mxu0 0.0
        %1589 = vmatpush1.msra.mxu0 %v1560
        %1590 = vmatprep.subr.mxu0 0.0
        %1591 = vmatpush1.msra.mxu0 %v1559
        %1592 = vmatprep.subr.mxu0 0.0
        %1593 = vmatpush1.msra.mxu0 %v1558
        %1594 = vmatprep.subr.mxu0 0.0
        %1595 = vmatpush1.msra.mxu0 %v1557
        %1596 = vmatprep.subr.mxu0 0.0
        %1597 = vmatpush2.msra.mxu0 0.0
        %1598 = vmatprep.subr.mxu0 0.0
        %1599 = vmatpush2.msra.mxu0 0.0
        %1600 = vmatprep.subr.mxu0 0.0
        %1601 = vmatpush2.msra.mxu0 0.0
        %1602 = vmatprep.subr.mxu0 0.0
        %1603 = vmatpush2.msra.mxu0 0.0
        %1604 = vmatprep.subr.mxu0 0.0
        %1605 = vmatpush2.msra.mxu0 0.0
        %1606 = vmatprep.subr.mxu0 0.0
        %1607 = vmatpush2.msra.mxu0 0.0
        %1608 = vmatprep.subr.mxu0 0.0
        %1609 = vmatpush2.msra.mxu0 0.0
        %1610 = vmatprep.subr.mxu0 0.0
        %1611 = vmatpush2.msra.mxu0 0.0
        %1612 = vmatprep.subr.mxu0 0.0
        %1613 = vmatpush2.msra.mxu0 0.0
        %1614 = vmatprep.subr.mxu0 0.0
        %1615 = vmatpush2.msra.mxu0 0.0
        %1616 = vmatprep.subr.mxu0 0.0
        %1617 = vmatpush2.msra.mxu0 0.0
        %1618 = vmatprep.subr.mxu0 0.0
        %1619 = vmatpush2.msra.mxu0 0.0
        %1620 = vmatprep.subr.mxu0 0.0
        %1621 = vmatpush2.msra.mxu0 0.0
        %1622 = vmatprep.subr.mxu0 0.0
        %1623 = vmatpush2.msra.mxu0 0.0
        %1624 = vmatprep.subr.mxu0 0.0
        %1625 = vmatpush2.msra.mxu0 0.0
        %1626 = vmatprep.subr.mxu0 0.0
        %1627 = vmatpush2.msra.mxu0 0.0
        %1628 = vmatprep.mubr.f32.mxu0 0.0
        %1629 = vmatmul.mubr.f32.gmra.mxu0 %v1562
        %v1630 = vpop.f32.mrf.mxu0
        %v1631 = vadd.f32 0.0, %v1630
        %v1632 = vpop.f32.mrf.mxu0
        %1633 = vdwg.mxu0
        %v1634 = vadd.f32 %v1553, %v1631
        %v1635 = vld [vmem:[%s6] sm:$0x1]
        %v1636 = vadd.f32 %v1634, %v1635
        %v1637 = vmax.f32 %v1636, 0.0
        %v1638 = vld [vmem:[#allocation8] sm:$0xff]
        %v1639 = vld [vmem:[#allocation8 + $0x8] sm:$0xff]
        %v1640 = vld [vmem:[#allocation8 + $0x10] sm:$0xff]
        %v1641 = vld [vmem:[#allocation8 + $0x18] sm:$0xff]
        %v1642 = vld [vmem:[#allocation8 + $0x20] sm:$0xff]
        %v1643 = vld [vmem:[#allocation8 + $0x28] sm:$0xff]
        %v1644 = vld [vmem:[#allocation8 + $0x30] sm:$0xff]
        %v1645 = vld [vmem:[#allocation8 + $0x38] sm:$0xff]
        %v1646 = vld [vmem:[#allocation8 + $0x40] sm:$0xff]
        %v1647 = vld [vmem:[#allocation8 + $0x48] sm:$0xff]
        %v1648 = vld [vmem:[#allocation8 + $0x50] sm:$0xff]
        %v1649 = vld [vmem:[#allocation8 + $0x58] sm:$0xff]
        %v1650 = vld [vmem:[%s8] sm:$0x1]
        %vm1651 = vcmask 785408
        %v1653 = vsel %vm1651, %v1637, 0
        %1655 = vmatprep.subr.mxu0 0.0
        %1656 = vmatpush1.msra.mxu0 0.0
        %1657 = vmatprep.subr.mxu0 0.0
        %1658 = vmatpush1.msra.mxu0 0.0
        %1659 = vmatprep.subr.mxu0 0.0
        %1660 = vmatpush1.msra.mxu0 0.0
        %1661 = vmatprep.subr.mxu0 0.0
        %1662 = vmatpush1.msra.mxu0 0.0
        %1663 = vmatprep.subr.mxu0 0.0
        %1664 = vmatpush1.msra.mxu0 %v1649
        %1665 = vmatprep.subr.mxu0 0.0
        %1666 = vmatpush1.msra.mxu0 %v1648
        %1667 = vmatprep.subr.mxu0 0.0
        %1668 = vmatpush1.msra.mxu0 %v1647
        %1669 = vmatprep.subr.mxu0 0.0
        %1670 = vmatpush1.msra.mxu0 %v1646
        %1671 = vmatprep.subr.mxu0 0.0
        %1672 = vmatpush1.msra.mxu0 %v1645
        %1673 = vmatprep.subr.mxu0 0.0
        %1674 = vmatpush1.msra.mxu0 %v1644
        %1675 = vmatprep.subr.mxu0 0.0
        %1676 = vmatpush1.msra.mxu0 %v1643
        %1677 = vmatprep.subr.mxu0 0.0
        %1678 = vmatpush1.msra.mxu0 %v1642
        %1679 = vmatprep.subr.mxu0 0.0
        %1680 = vmatpush1.msra.mxu0 %v1641
        %1681 = vmatprep.subr.mxu0 0.0
        %1682 = vmatpush1.msra.mxu0 %v1640
        %1683 = vmatprep.subr.mxu0 0.0
        %1684 = vmatpush1.msra.mxu0 %v1639
        %1685 = vmatprep.subr.mxu0 0.0
        %1686 = vmatpush1.msra.mxu0 %v1638
        %1687 = vmatprep.subr.mxu0 0.0
        %1688 = vmatpush2.msra.mxu0 0.0
        %1689 = vmatprep.subr.mxu0 0.0
        %1690 = vmatpush2.msra.mxu0 0.0
        %1691 = vmatprep.subr.mxu0 0.0
        %1692 = vmatpush2.msra.mxu0 0.0
        %1693 = vmatprep.subr.mxu0 0.0
        %1694 = vmatpush2.msra.mxu0 0.0
        %1695 = vmatprep.subr.mxu0 0.0
        %1696 = vmatpush2.msra.mxu0 0.0
        %1697 = vmatprep.subr.mxu0 0.0
        %1698 = vmatpush2.msra.mxu0 0.0
        %1699 = vmatprep.subr.mxu0 0.0
        %1700 = vmatpush2.msra.mxu0 0.0
        %1701 = vmatprep.subr.mxu0 0.0
        %1702 = vmatpush2.msra.mxu0 0.0
        %1703 = vmatprep.subr.mxu0 0.0
        %1704 = vmatpush2.msra.mxu0 0.0
        %1705 = vmatprep.subr.mxu0 0.0
        %1706 = vmatpush2.msra.mxu0 0.0
        %1707 = vmatprep.subr.mxu0 0.0
        %1708 = vmatpush2.msra.mxu0 0.0
        %1709 = vmatprep.subr.mxu0 0.0
        %1710 = vmatpush2.msra.mxu0 0.0
        %1711 = vmatprep.subr.mxu0 0.0
        %1712 = vmatpush2.msra.mxu0 0.0
        %1713 = vmatprep.subr.mxu0 0.0
        %1714 = vmatpush2.msra.mxu0 0.0
        %1715 = vmatprep.subr.mxu0 0.0
        %1716 = vmatpush2.msra.mxu0 0.0
        %1717 = vmatprep.subr.mxu0 0.0
        %1718 = vmatpush2.msra.mxu0 0.0
        %1719 = vmatprep.mubr.f32.mxu0 0.0
        %1720 = vmatmul.mubr.f32.gmra.mxu0 %v1653
        %v1721 = vpop.f32.mrf.mxu0
        %v1722 = vadd.f32 %v1650, %v1721
        %v1723 = vpop.f32.mrf.mxu0
        %1724 = vdwg.mxu0
        %1725 = vst [vmem:[%s406] sm:$0x1] %v1722
        %s1726 = sand.u32 %s235, 1
        %s1727 = scalar_lea.sflag [#allocation4], %s1726
        %s1728 = sand.u32 %s235, 1
        %s1729 = scalar_lea.vmem [#allocation10], %s1728
        // Predicated region
        $region73: #{tpu_custom_call.1} parent=55 // pred_check
          %p1730 = pneg %p245
        $region74: #{tpu_custom_call.1} parent=55 // pred_check_branch
          %1732 = sbr.rel (%p1730) target = $region76
        $region75: #{tpu_custom_call.1} parent=55 // pred_region
          %s1734 = ssub.s32 16, 16
          %1735 = vsyncadd %s1727, %s1734
          %s1736 = smul.addr %s28, 16
          %s1737 = scalar_lea.hbm %s9, %s1736
          %s1739 = sshll.u32 %s1729, 4
          %s1740 = int_to_ptr.vmem [resolvable:$true] %s1739
          %1742 = dma.vmem_to_hbm [thread:$0]  %s1740, 16, %s1737, %s1727
        $region76: #{tpu_custom_call.1} parent=55 // pred_fallthru
          _
      $region56: #{tpu_custom_call.1} parent=5 // pred_fallthru
        _
      %p1743 = scmp.le.s32.totalorder 2, %s23
      // Predicated region
      $region77: #{tpu_custom_call.1} parent=5 // pred_check
        %p1744 = pneg %p1743
      $region78: #{tpu_custom_call.1} parent=5 // pred_check_branch
        %1746 = sbr.rel (%p1744) target = $region80
      $region79: #{tpu_custom_call.1} parent=5 // pred_region
        %s1747 = ssub.s32 %s23, 2
        // Predicated region
        $region81: #{tpu_custom_call.1} parent=79 // pred_check
          %p1748 = pneg %p251
        $region82: #{tpu_custom_call.1} parent=79 // pred_check_branch
          %1750 = sbr.rel (%p1748) target = $region84
        $region83: #{tpu_custom_call.1} parent=79 // pred_region
          %s1751 = sand.u32 %s236, 1
          %s1752 = scalar_lea.sflag [#allocation4], %s1751
          %s1753 = sand.u32 %s236, 1
          %s1754 = scalar_lea.vmem [#allocation10], %s1753
          %1755 = dma.done %s1752, 16
        $region84: #{tpu_custom_call.1} parent=79 // pred_fallthru
          _
      $region80: #{tpu_custom_call.1} parent=5 // pred_fallthru
        _
    $region6: #{tpu_custom_call.1} parent=1 // loop_footer
      %s27 = sadd.s32 1, %s23
    $region7: #{tpu_custom_call.1} parent=1 // loop_footer_branch
      %22 = sbr.rel target = $region3
    $region8: #{tpu_custom_call.1} parent=1 // loop_exit
      _
    %1756 = vsyncpa [#allocation3], 1
    %s1757 = scalar_lea.sflag [#allocation3], 1
    %1758 = vsyncpa %s1757, 1
    %1759 = vsyncpa [#allocation6], 1
    %1760 = vsyncpa [#allocation9], 1
    %1761 = vsyncpa [#allocation4], 1
    %s1762 = scalar_lea.sflag [#allocation4], 1
    %1763 = vsyncpa %s1762, 1

</llo_original>
